<compile_context>
chip_gen: v7x
topology: tpu7x:2x2x1
jax: 0.10.0
libtpu: 0.0.40
codegen_flags: <defaults>
</compile_context>

<pallas_src>
import jax
import jax.numpy as jnp
from jax import lax
from jax.experimental import pallas as pl
from jax.experimental.pallas import tpu as pltpu


# (Cin, Cout, padding) for each Conv1d(kernel=2, stride=2) layer of Encode192.
_LAYER_SPECS = (
    (192, 144, 1),
    (144, 96, 0),
    (96, 48, 0),
    (48, 24, 0),
)


def _encode192_kernel(x_ref,
                      wa_ref, ba_ref, wb_ref, bb_ref,
                      wc_ref, bc_ref, wd_ref, bd_ref,
                      o_ref):
    """Fused 4-layer encoder for one batch tile.

    x_ref: (L, 192, bt) bf16  -- position-major, channel sublanes, batch lanes.
    Activations between layers: (C, Lc*bt) with column = position*bt + batch.
    """
    L, cin, bt = x_ref.shape
    zero_slab = jnp.zeros((cin, bt), jnp.bfloat16)

    # ---- layer a: Conv1d(192->144, k=2, s=2, pad=1) ------------------------
    # Padded position p corresponds to x[p-1]; p=0 and p=L+1 are zeros.
    l1 = L // 2 + 1
    e_blocks, od_blocks = [], []
    for t in range(l1):
        pe, po = 2 * t, 2 * t + 1
        e_blocks.append(zero_slab if pe == 0 else x_ref[pe - 1])
        od_blocks.append(zero_slab if po == L + 1 else x_ref[po - 1])
    patches = jnp.concatenate(
        [jnp.concatenate(e_blocks, axis=1),          # (192, l1*bt)  -> W[:, :, 0]
         jnp.concatenate(od_blocks, axis=1)],        # (192, l1*bt)  -> W[:, :, 1]
        axis=0)                                      # (384, l1*bt)
    acc = jnp.dot(wa_ref[...], patches,
                  preferred_element_type=jnp.float32) + ba_ref[...]
    act = acc.astype(jnp.bfloat16)                   # (144, l1*bt)

    # ---- layers b, c, d: Conv1d(k=2, s=2, pad=0) ---------------------------
    lc = l1
    for w_ref, b_ref in ((wb_ref, bb_ref), (wc_ref, bc_ref), (wd_ref, bd_ref)):
        lo = lc // 2                                 # == (lc - 2) // 2 + 1
        evens = jnp.concatenate(
            [act[:, (2 * t) * bt:(2 * t + 1) * bt] for t in range(lo)], axis=1)
        odds = jnp.concatenate(
            [act[:, (2 * t + 1) * bt:(2 * t + 2) * bt] for t in range(lo)], axis=1)
        patches = jnp.concatenate([evens, odds], axis=0)   # (2*C, lo*bt)
        acc = jnp.dot(w_ref[...], patches,
                      preferred_element_type=jnp.float32) + b_ref[...]
        act = acc.astype(jnp.bfloat16)
        lc = lo

    # Final layer kept in f32 (no extra bf16 round-trip); lane-dense store.
    o_ref[...] = acc.astype(o_ref.dtype)             # (24, l_out*bt)


def encode192(x, params, *, batch_tile=128):
    """Fused Encode192 forward: x (N, 192, L) f32 -> (N, 24, L_out) f32."""
    n, cin, length = x.shape
    assert cin == _LAYER_SPECS[0][0], cin

    # Per-layer output lengths (PyTorch floor semantics).
    lens = []
    lc = length + 2 * _LAYER_SPECS[0][2]
    for _ in _LAYER_SPECS:
        lc = (lc - 2) // 2 + 1
        assert lc >= 1, "sequence too short for Encode192"
        lens.append(lc)
    l_out = lens[-1]
    c_out = _LAYER_SPECS[-1][1]

    # Batch tile: a single tile if the batch fits, otherwise a multiple of 128
    # so the trailing (lane) block dims satisfy TPU tiling and stay lane-dense.
    if n <= batch_tile:
        bt = n
    else:
        bt = max(128, (batch_tile // 128) * 128)
        # Keep the double-buffered bf16 input block comfortably inside VMEM.
        cap = max(128, ((12 << 20) // (length * cin * 2)) // 128 * 128)
        bt = min(bt, cap)
    n_pad = pl.cdiv(n, bt) * bt
    num_tiles = n_pad // bt

    # Single fused XLA relayout of the input: (N,192,L) f32 -> (L,192,N) bf16.
    # This puts channels in sublanes / batch in lanes so the kernel needs no
    # in-kernel transposes, strided slices, or selector matmuls.
    xt = jnp.transpose(x, (2, 1, 0)).astype(jnp.bfloat16)
    if n_pad != n:
        xt = jnp.pad(xt, ((0, 0), (0, 0), (0, n_pad - n)))

    inputs = [xt]
    in_specs = [pl.BlockSpec((length, cin, bt), lambda i: (0, 0, i))]
    flops = 0
    bytes_accessed = n * cin * length * 2 + n * c_out * l_out * 4
    ci = cin
    for (w, b), (_, co, _pad), lo in zip(params, _LAYER_SPECS, lens):
        assert w.shape == (co, ci, 2), (w.shape, co, ci)
        # W0|W1 concatenated along K -> one GEMM per layer against [E; O].
        wcat = jnp.concatenate([w[:, :, 0], w[:, :, 1]], axis=1).astype(jnp.bfloat16)
        bcol = b.reshape(co, 1).astype(jnp.float32)
        inputs += [wcat, bcol]
        # Weights/bias: full-array blocks, constant index_map -> VMEM-resident.
        in_specs += [pl.BlockSpec((co, 2 * ci), lambda i: (0, 0)),
                     pl.BlockSpec((co, 1), lambda i: (0, 0))]
        flops += 2 * n * co * (2 * ci) * lo
        bytes_accessed += wcat.size * 2 + co * 4
        ci = co

    out = pl.pallas_call(
        _encode192_kernel,
        out_shape=jax.ShapeDtypeStruct((c_out, num_tiles * l_out * bt),
                                       jnp.float32),
        grid=(num_tiles,),
        in_specs=in_specs,
        out_specs=pl.BlockSpec((c_out, l_out * bt), lambda i: (0, i)),
        compiler_params=pltpu.CompilerParams(
            dimension_semantics=("parallel",),      # batch tiles shard across TCs
            vmem_limit_bytes=48 * 1024 * 1024,      # safe on v7x (64 MiB physical)
        ),
        cost_estimate=pl.CostEstimate(
            flops=int(flops), transcendentals=0,
            bytes_accessed=int(bytes_accessed)),
    )(*inputs)

    # Cheap wrapper-side unscramble of the tiny lane-dense output slab:
    # (24, tiles*l_out*bt) -> (N, 24, L_out).
    out = out.reshape(c_out, num_tiles, l_out, bt)
    out = out.transpose(1, 3, 0, 2).reshape(n_pad, c_out, l_out)
    return out[:n]


def init_encode192_params(key):
    """PyTorch-style default init for the four Conv1d layers: list of (w, b)."""
    params = []
    for i, (ci, co, _) in enumerate(_LAYER_SPECS):
        kw, kb = jax.random.split(jax.random.fold_in(key, i))
        bound = 1.0 / (ci * 2) ** 0.5
        w = jax.random.uniform(kw, (co, ci, 2), jnp.float32, -bound, bound)
        b = jax.random.uniform(kb, (co,), jnp.float32, -bound, bound)
        params.append((w, b))
    return params


def encode192_ref(x, params):
    """Pure-JAX f32 reference (matches PyTorch Conv1d semantics)."""
    for (w, b), (_, _, pad) in zip(params, _LAYER_SPECS):
        x = lax.conv_general_dilated(
            x, w,
            window_strides=(2,),
            padding=[(pad, pad)],
            dimension_numbers=("NCH", "OIH", "NCH"),
            precision=lax.Precision.HIGHEST,
        ) + b[None, :, None]
    return x


if __name__ == "__main__":
    key = jax.random.PRNGKey(0)
    kx, kp = jax.random.split(key)

    # Small shapes consistent with the module: batch=2, channels=192, L=16.
    x = jax.random.normal(kx, (2, 192, 16), dtype=jnp.float32)
    params = init_encode192_params(kp)

    out = jax.block_until_ready(jax.jit(encode192)(x, params))
    ref = jax.block_until_ready(encode192_ref(x, params))

    assert out.shape == (2, 24, 1), out.shape
    # bf16 GEMMs with f32 accumulation vs. a HIGHEST-precision f32 reference.
    max_err = float(jnp.max(jnp.abs(out - ref)))
    assert max_err < 2e-2, max_err
    print("KERNEL_OK")
</pallas_src>

<mosaic_0001>
module attributes {stable_mosaic.version = 11 : i64} {
  func.func @_encode192_kernel(%arg0: i32, %arg1: memref<16x192x2xbf16, #tpu.memory_space<vmem>>, %arg2: memref<144x384xbf16, #tpu.memory_space<vmem>>, %arg3: memref<144x1xf32, #tpu.memory_space<vmem>>, %arg4: memref<96x288xbf16, #tpu.memory_space<vmem>>, %arg5: memref<96x1xf32, #tpu.memory_space<vmem>>, %arg6: memref<48x192xbf16, #tpu.memory_space<vmem>>, %arg7: memref<48x1xf32, #tpu.memory_space<vmem>>, %arg8: memref<24x96xbf16, #tpu.memory_space<vmem>>, %arg9: memref<24x1xf32, #tpu.memory_space<vmem>>, %arg10: memref<24x2xf32, #tpu.memory_space<vmem>>) attributes {dimension_semantics = [#tpu.dimension_semantics<parallel>], iteration_bounds = array<i64: 1>, scalar_prefetch = 0 : i64, scratch_operands = 0 : i64, tpu.core_type = #tpu.core_type<tc>, window_params = [{transform_indices = @transform_0, window_bounds = array<i64: 16, 192, 2>}, {pipeline_mode = #tpu.pipeline_mode<synchronous>, transform_indices = @transform_1, window_bounds = array<i64: 144, 384>}, {pipeline_mode = #tpu.pipeline_mode<synchronous>, transform_indices = @transform_2, window_bounds = array<i64: 144, 1>}, {pipeline_mode = #tpu.pipeline_mode<synchronous>, transform_indices = @transform_3, window_bounds = array<i64: 96, 288>}, {pipeline_mode = #tpu.pipeline_mode<synchronous>, transform_indices = @transform_4, window_bounds = array<i64: 96, 1>}, {pipeline_mode = #tpu.pipeline_mode<synchronous>, transform_indices = @transform_5, window_bounds = array<i64: 48, 192>}, {pipeline_mode = #tpu.pipeline_mode<synchronous>, transform_indices = @transform_6, window_bounds = array<i64: 48, 1>}, {pipeline_mode = #tpu.pipeline_mode<synchronous>, transform_indices = @transform_7, window_bounds = array<i64: 24, 96>}, {pipeline_mode = #tpu.pipeline_mode<synchronous>, transform_indices = @transform_8, window_bounds = array<i64: 24, 1>}, {transform_indices = @transform_9, window_bounds = array<i64: 24, 2>}]} {
    %cst = arith.constant 0.000000e+00 : bf16
    %0 = vector.broadcast %cst : bf16 to vector<192x2xbf16>
    %c0 = arith.constant 0 : index
    %c0_0 = arith.constant 0 : index
    %c0_1 = arith.constant 0 : index
    %1 = vector.load %arg1[%c0, %c0_0, %c0_1] : memref<16x192x2xbf16, #tpu.memory_space<vmem>>, vector<1x192x2xbf16>
    %2 = vector.shape_cast %1 : vector<1x192x2xbf16> to vector<192x2xbf16>
    %c1 = arith.constant 1 : index
    %c0_2 = arith.constant 0 : index
    %c0_3 = arith.constant 0 : index
    %3 = vector.load %arg1[%c1, %c0_2, %c0_3] : memref<16x192x2xbf16, #tpu.memory_space<vmem>>, vector<1x192x2xbf16>
    %4 = vector.shape_cast %3 : vector<1x192x2xbf16> to vector<192x2xbf16>
    %c2 = arith.constant 2 : index
    %c0_4 = arith.constant 0 : index
    %c0_5 = arith.constant 0 : index
    %5 = vector.load %arg1[%c2, %c0_4, %c0_5] : memref<16x192x2xbf16, #tpu.memory_space<vmem>>, vector<1x192x2xbf16>
    %6 = vector.shape_cast %5 : vector<1x192x2xbf16> to vector<192x2xbf16>
    %c3 = arith.constant 3 : index
    %c0_6 = arith.constant 0 : index
    %c0_7 = arith.constant 0 : index
    %7 = vector.load %arg1[%c3, %c0_6, %c0_7] : memref<16x192x2xbf16, #tpu.memory_space<vmem>>, vector<1x192x2xbf16>
    %8 = vector.shape_cast %7 : vector<1x192x2xbf16> to vector<192x2xbf16>
    %c4 = arith.constant 4 : index
    %c0_8 = arith.constant 0 : index
    %c0_9 = arith.constant 0 : index
    %9 = vector.load %arg1[%c4, %c0_8, %c0_9] : memref<16x192x2xbf16, #tpu.memory_space<vmem>>, vector<1x192x2xbf16>
    %10 = vector.shape_cast %9 : vector<1x192x2xbf16> to vector<192x2xbf16>
    %c5 = arith.constant 5 : index
    %c0_10 = arith.constant 0 : index
    %c0_11 = arith.constant 0 : index
    %11 = vector.load %arg1[%c5, %c0_10, %c0_11] : memref<16x192x2xbf16, #tpu.memory_space<vmem>>, vector<1x192x2xbf16>
    %12 = vector.shape_cast %11 : vector<1x192x2xbf16> to vector<192x2xbf16>
    %c6 = arith.constant 6 : index
    %c0_12 = arith.constant 0 : index
    %c0_13 = arith.constant 0 : index
    %13 = vector.load %arg1[%c6, %c0_12, %c0_13] : memref<16x192x2xbf16, #tpu.memory_space<vmem>>, vector<1x192x2xbf16>
    %14 = vector.shape_cast %13 : vector<1x192x2xbf16> to vector<192x2xbf16>
    %c7 = arith.constant 7 : index
    %c0_14 = arith.constant 0 : index
    %c0_15 = arith.constant 0 : index
    %15 = vector.load %arg1[%c7, %c0_14, %c0_15] : memref<16x192x2xbf16, #tpu.memory_space<vmem>>, vector<1x192x2xbf16>
    %16 = vector.shape_cast %15 : vector<1x192x2xbf16> to vector<192x2xbf16>
    %c8 = arith.constant 8 : index
    %c0_16 = arith.constant 0 : index
    %c0_17 = arith.constant 0 : index
    %17 = vector.load %arg1[%c8, %c0_16, %c0_17] : memref<16x192x2xbf16, #tpu.memory_space<vmem>>, vector<1x192x2xbf16>
    %18 = vector.shape_cast %17 : vector<1x192x2xbf16> to vector<192x2xbf16>
    %c9 = arith.constant 9 : index
    %c0_18 = arith.constant 0 : index
    %c0_19 = arith.constant 0 : index
    %19 = vector.load %arg1[%c9, %c0_18, %c0_19] : memref<16x192x2xbf16, #tpu.memory_space<vmem>>, vector<1x192x2xbf16>
    %20 = vector.shape_cast %19 : vector<1x192x2xbf16> to vector<192x2xbf16>
    %c10 = arith.constant 10 : index
    %c0_20 = arith.constant 0 : index
    %c0_21 = arith.constant 0 : index
    %21 = vector.load %arg1[%c10, %c0_20, %c0_21] : memref<16x192x2xbf16, #tpu.memory_space<vmem>>, vector<1x192x2xbf16>
    %22 = vector.shape_cast %21 : vector<1x192x2xbf16> to vector<192x2xbf16>
    %c11 = arith.constant 11 : index
    %c0_22 = arith.constant 0 : index
    %c0_23 = arith.constant 0 : index
    %23 = vector.load %arg1[%c11, %c0_22, %c0_23] : memref<16x192x2xbf16, #tpu.memory_space<vmem>>, vector<1x192x2xbf16>
    %24 = vector.shape_cast %23 : vector<1x192x2xbf16> to vector<192x2xbf16>
    %c12 = arith.constant 12 : index
    %c0_24 = arith.constant 0 : index
    %c0_25 = arith.constant 0 : index
    %25 = vector.load %arg1[%c12, %c0_24, %c0_25] : memref<16x192x2xbf16, #tpu.memory_space<vmem>>, vector<1x192x2xbf16>
    %26 = vector.shape_cast %25 : vector<1x192x2xbf16> to vector<192x2xbf16>
    %c13 = arith.constant 13 : index
    %c0_26 = arith.constant 0 : index
    %c0_27 = arith.constant 0 : index
    %27 = vector.load %arg1[%c13, %c0_26, %c0_27] : memref<16x192x2xbf16, #tpu.memory_space<vmem>>, vector<1x192x2xbf16>
    %28 = vector.shape_cast %27 : vector<1x192x2xbf16> to vector<192x2xbf16>
    %c14 = arith.constant 14 : index
    %c0_28 = arith.constant 0 : index
    %c0_29 = arith.constant 0 : index
    %29 = vector.load %arg1[%c14, %c0_28, %c0_29] : memref<16x192x2xbf16, #tpu.memory_space<vmem>>, vector<1x192x2xbf16>
    %30 = vector.shape_cast %29 : vector<1x192x2xbf16> to vector<192x2xbf16>
    %c15 = arith.constant 15 : index
    %c0_30 = arith.constant 0 : index
    %c0_31 = arith.constant 0 : index
    %31 = vector.load %arg1[%c15, %c0_30, %c0_31] : memref<16x192x2xbf16, #tpu.memory_space<vmem>>, vector<1x192x2xbf16>
    %32 = vector.shape_cast %31 : vector<1x192x2xbf16> to vector<192x2xbf16>
    %33 = tpu.concatenate %0, %4, %8, %12, %16, %20, %24, %28, %32 in 1 : vector<192x2xbf16>, vector<192x2xbf16>, vector<192x2xbf16>, vector<192x2xbf16>, vector<192x2xbf16>, vector<192x2xbf16>, vector<192x2xbf16>, vector<192x2xbf16>, vector<192x2xbf16> -> vector<192x18xbf16>
    %34 = tpu.concatenate %2, %6, %10, %14, %18, %22, %26, %30, %0 in 1 : vector<192x2xbf16>, vector<192x2xbf16>, vector<192x2xbf16>, vector<192x2xbf16>, vector<192x2xbf16>, vector<192x2xbf16>, vector<192x2xbf16>, vector<192x2xbf16>, vector<192x2xbf16> -> vector<192x18xbf16>
    %35 = tpu.concatenate %33, %34 in 0 : vector<192x18xbf16>, vector<192x18xbf16> -> vector<384x18xbf16>
    %c0_32 = arith.constant 0 : index
    %c0_33 = arith.constant 0 : index
    %36 = vector.load %arg2[%c0_32, %c0_33] : memref<144x384xbf16, #tpu.memory_space<vmem>>, vector<144x384xbf16>
    %cst_34 = arith.constant dense<0.000000e+00> : vector<144x18xf32>
    %37 = tpu.matmul %36, %35, %cst_34 {dimension_numbers = #tpu.dot_dimension_numbers<[1], [0], [0], [1], [0, 0, 1, 1], [], []>} : vector<144x384xbf16>, vector<384x18xbf16>, vector<144x18xf32> -> vector<144x18xf32>
    %c0_35 = arith.constant 0 : index
    %c0_36 = arith.constant 0 : index
    %38 = vector.load %arg3[%c0_35, %c0_36] : memref<144x1xf32, #tpu.memory_space<vmem>>, vector<144x1xf32>
    %39 = vector.broadcast %38 : vector<144x1xf32> to vector<144x18xf32>
    %40 = arith.addf %37, %39 : vector<144x18xf32>
    %41 = arith.truncf %40 : vector<144x18xf32> to vector<144x18xbf16>
    %42 = vector.extract_strided_slice %41 {offsets = [0, 0], sizes = [144, 2], strides = [1, 1]} : vector<144x18xbf16> to vector<144x2xbf16>
    %43 = vector.extract_strided_slice %41 {offsets = [0, 4], sizes = [144, 2], strides = [1, 1]} : vector<144x18xbf16> to vector<144x2xbf16>
    %44 = vector.extract_strided_slice %41 {offsets = [0, 8], sizes = [144, 2], strides = [1, 1]} : vector<144x18xbf16> to vector<144x2xbf16>
    %45 = vector.extract_strided_slice %41 {offsets = [0, 12], sizes = [144, 2], strides = [1, 1]} : vector<144x18xbf16> to vector<144x2xbf16>
    %46 = tpu.concatenate %42, %43, %44, %45 in 1 : vector<144x2xbf16>, vector<144x2xbf16>, vector<144x2xbf16>, vector<144x2xbf16> -> vector<144x8xbf16>
    %47 = vector.extract_strided_slice %41 {offsets = [0, 2], sizes = [144, 2], strides = [1, 1]} : vector<144x18xbf16> to vector<144x2xbf16>
    %48 = vector.extract_strided_slice %41 {offsets = [0, 6], sizes = [144, 2], strides = [1, 1]} : vector<144x18xbf16> to vector<144x2xbf16>
    %49 = vector.extract_strided_slice %41 {offsets = [0, 10], sizes = [144, 2], strides = [1, 1]} : vector<144x18xbf16> to vector<144x2xbf16>
    %50 = vector.extract_strided_slice %41 {offsets = [0, 14], sizes = [144, 2], strides = [1, 1]} : vector<144x18xbf16> to vector<144x2xbf16>
    %51 = tpu.concatenate %47, %48, %49, %50 in 1 : vector<144x2xbf16>, vector<144x2xbf16>, vector<144x2xbf16>, vector<144x2xbf16> -> vector<144x8xbf16>
    %52 = tpu.concatenate %46, %51 in 0 : vector<144x8xbf16>, vector<144x8xbf16> -> vector<288x8xbf16>
    %c0_37 = arith.constant 0 : index
    %c0_38 = arith.constant 0 : index
    %53 = vector.load %arg4[%c0_37, %c0_38] : memref<96x288xbf16, #tpu.memory_space<vmem>>, vector<96x288xbf16>
    %cst_39 = arith.constant dense<0.000000e+00> : vector<96x8xf32>
    %54 = tpu.matmul %53, %52, %cst_39 {dimension_numbers = #tpu.dot_dimension_numbers<[1], [0], [0], [1], [0, 0, 1, 1], [], []>} : vector<96x288xbf16>, vector<288x8xbf16>, vector<96x8xf32> -> vector<96x8xf32>
    %c0_40 = arith.constant 0 : index
    %c0_41 = arith.constant 0 : index
    %55 = vector.load %arg5[%c0_40, %c0_41] : memref<96x1xf32, #tpu.memory_space<vmem>>, vector<96x1xf32>
    %56 = vector.broadcast %55 : vector<96x1xf32> to vector<96x8xf32>
    %57 = arith.addf %54, %56 : vector<96x8xf32>
    %58 = arith.truncf %57 : vector<96x8xf32> to vector<96x8xbf16>
    %59 = vector.extract_strided_slice %58 {offsets = [0, 0], sizes = [96, 2], strides = [1, 1]} : vector<96x8xbf16> to vector<96x2xbf16>
    %60 = vector.extract_strided_slice %58 {offsets = [0, 4], sizes = [96, 2], strides = [1, 1]} : vector<96x8xbf16> to vector<96x2xbf16>
    %61 = tpu.concatenate %59, %60 in 1 : vector<96x2xbf16>, vector<96x2xbf16> -> vector<96x4xbf16>
    %62 = vector.extract_strided_slice %58 {offsets = [0, 2], sizes = [96, 2], strides = [1, 1]} : vector<96x8xbf16> to vector<96x2xbf16>
    %63 = vector.extract_strided_slice %58 {offsets = [0, 6], sizes = [96, 2], strides = [1, 1]} : vector<96x8xbf16> to vector<96x2xbf16>
    %64 = tpu.concatenate %62, %63 in 1 : vector<96x2xbf16>, vector<96x2xbf16> -> vector<96x4xbf16>
    %65 = tpu.concatenate %61, %64 in 0 : vector<96x4xbf16>, vector<96x4xbf16> -> vector<192x4xbf16>
    %c0_42 = arith.constant 0 : index
    %c0_43 = arith.constant 0 : index
    %66 = vector.load %arg6[%c0_42, %c0_43] : memref<48x192xbf16, #tpu.memory_space<vmem>>, vector<48x192xbf16>
    %cst_44 = arith.constant dense<0.000000e+00> : vector<48x4xf32>
    %67 = tpu.matmul %66, %65, %cst_44 {dimension_numbers = #tpu.dot_dimension_numbers<[1], [0], [0], [1], [0, 0, 1, 1], [], []>} : vector<48x192xbf16>, vector<192x4xbf16>, vector<48x4xf32> -> vector<48x4xf32>
    %c0_45 = arith.constant 0 : index
    %c0_46 = arith.constant 0 : index
    %68 = vector.load %arg7[%c0_45, %c0_46] : memref<48x1xf32, #tpu.memory_space<vmem>>, vector<48x1xf32>
    %69 = vector.broadcast %68 : vector<48x1xf32> to vector<48x4xf32>
    %70 = arith.addf %67, %69 : vector<48x4xf32>
    %71 = arith.truncf %70 : vector<48x4xf32> to vector<48x4xbf16>
    %72 = vector.extract_strided_slice %71 {offsets = [0, 0], sizes = [48, 2], strides = [1, 1]} : vector<48x4xbf16> to vector<48x2xbf16>
    %73 = vector.extract_strided_slice %71 {offsets = [0, 2], sizes = [48, 2], strides = [1, 1]} : vector<48x4xbf16> to vector<48x2xbf16>
    %74 = tpu.concatenate %72, %73 in 0 : vector<48x2xbf16>, vector<48x2xbf16> -> vector<96x2xbf16>
    %c0_47 = arith.constant 0 : index
    %c0_48 = arith.constant 0 : index
    %75 = vector.load %arg8[%c0_47, %c0_48] : memref<24x96xbf16, #tpu.memory_space<vmem>>, vector<24x96xbf16>
    %cst_49 = arith.constant dense<0.000000e+00> : vector<24x2xf32>
    %76 = tpu.matmul %75, %74, %cst_49 {dimension_numbers = #tpu.dot_dimension_numbers<[1], [0], [0], [1], [0, 0, 1, 1], [], []>} : vector<24x96xbf16>, vector<96x2xbf16>, vector<24x2xf32> -> vector<24x2xf32>
    %c0_50 = arith.constant 0 : index
    %c0_51 = arith.constant 0 : index
    %77 = vector.load %arg9[%c0_50, %c0_51] : memref<24x1xf32, #tpu.memory_space<vmem>>, vector<24x1xf32>
    %78 = vector.broadcast %77 : vector<24x1xf32> to vector<24x2xf32>
    %79 = arith.addf %76, %78 : vector<24x2xf32>
    %c0_52 = arith.constant 0 : index
    %c0_53 = arith.constant 0 : index
    %80 = vector.load %arg10[%c0_52, %c0_53] : memref<24x2xf32, #tpu.memory_space<vmem>>, vector<24x2xf32>
    tpu.vector_store %arg10[%c0_52, %c0_53], %79 {strides = array<i32>} : memref<24x2xf32, #tpu.memory_space<vmem>>, vector<24x2xf32>,
    return
  }
  func.func @transform_0(%arg0: i32) -> (i32, i32, i32) {
    %c0_i32 = arith.constant 0 : i32
    %c0_i32_0 = arith.constant 0 : i32
    %c0_i32_1 = arith.constant 0 : i32
    return %c0_i32, %c0_i32_0, %arg0 : i32, i32, i32
  }
  func.func @transform_1(%arg0: i32) -> (i32, i32) {
    %c0_i32 = arith.constant 0 : i32
    %c0_i32_0 = arith.constant 0 : i32
    %c0_i32_1 = arith.constant 0 : i32
    return %c0_i32, %c0_i32_0 : i32, i32
  }
  func.func @transform_2(%arg0: i32) -> (i32, i32) {
    %c0_i32 = arith.constant 0 : i32
    %c0_i32_0 = arith.constant 0 : i32
    %c0_i32_1 = arith.constant 0 : i32
    return %c0_i32, %c0_i32_0 : i32, i32
  }
  func.func @transform_3(%arg0: i32) -> (i32, i32) {
    %c0_i32 = arith.constant 0 : i32
    %c0_i32_0 = arith.constant 0 : i32
    %c0_i32_1 = arith.constant 0 : i32
    return %c0_i32, %c0_i32_0 : i32, i32
  }
  func.func @transform_4(%arg0: i32) -> (i32, i32) {
    %c0_i32 = arith.constant 0 : i32
    %c0_i32_0 = arith.constant 0 : i32
    %c0_i32_1 = arith.constant 0 : i32
    return %c0_i32, %c0_i32_0 : i32, i32
  }
  func.func @transform_5(%arg0: i32) -> (i32, i32) {
    %c0_i32 = arith.constant 0 : i32
    %c0_i32_0 = arith.constant 0 : i32
    %c0_i32_1 = arith.constant 0 : i32
    return %c0_i32, %c0_i32_0 : i32, i32
  }
  func.func @transform_6(%arg0: i32) -> (i32, i32) {
    %c0_i32 = arith.constant 0 : i32
    %c0_i32_0 = arith.constant 0 : i32
    %c0_i32_1 = arith.constant 0 : i32
    return %c0_i32, %c0_i32_0 : i32, i32
  }
  func.func @transform_7(%arg0: i32) -> (i32, i32) {
    %c0_i32 = arith.constant 0 : i32
    %c0_i32_0 = arith.constant 0 : i32
    %c0_i32_1 = arith.constant 0 : i32
    return %c0_i32, %c0_i32_0 : i32, i32
  }
  func.func @transform_8(%arg0: i32) -> (i32, i32) {
    %c0_i32 = arith.constant 0 : i32
    %c0_i32_0 = arith.constant 0 : i32
    %c0_i32_1 = arith.constant 0 : i32
    return %c0_i32, %c0_i32_0 : i32, i32
  }
  func.func @transform_9(%arg0: i32) -> (i32, i32) {
    %c0_i32 = arith.constant 0 : i32
    %c0_i32_0 = arith.constant 0 : i32
    return %c0_i32, %arg0 : i32, i32
  }
}

</mosaic_0001>

<llo_original>
// kernel: encode192.1
$region0: #{encode192.1}
  #allocation0 [shape = 'u32[]', space=smem, size = 0x4, offset = 0x4, fixed_abs, tag = 'smem constant byte address 0x4 - core index']
  #allocation1 [shape = 'u32[144,128]{1,0:T(1,128)}', space=vmem, size = 0x12000, scoped, tag = 'internal scratch']
  %s0 = inlined_call_operand.vmem [shape: bf16[16,192,2], index: 0, kind: input, shape index: {}]
  %s1 = inlined_call_operand.vmem [shape: bf16[144,384], index: 1, kind: input, shape index: {}]
  %s2 = inlined_call_operand.vmem [shape: f32[144,1], index: 2, kind: input, shape index: {}]
  %s3 = inlined_call_operand.vmem [shape: bf16[96,288], index: 3, kind: input, shape index: {}]
  %s4 = inlined_call_operand.vmem [shape: f32[96,1], index: 4, kind: input, shape index: {}]
  %s5 = inlined_call_operand.vmem [shape: bf16[48,192], index: 5, kind: input, shape index: {}]
  %s6 = inlined_call_operand.vmem [shape: f32[48,1], index: 6, kind: input, shape index: {}]
  %s7 = inlined_call_operand.vmem [shape: bf16[24,96], index: 7, kind: input, shape index: {}]
  %s8 = inlined_call_operand.vmem [shape: f32[24,1], index: 8, kind: input, shape index: {}]
  %s9 = inlined_call_operand.vmem [shape: f32[24,2], index: 9, kind: output, shape index: {}]
  %s10 = sld [smem:[#allocation0]]
  $region46: #{encode192.1} parent=0
    _
  %s12 = ssub.s32 1, %s10
  %s13 = scalar_select 0, %s12, %s10
  // Predicated region
  $region2: #{encode192.1} parent=0 // pred_check
    _
  $region3: #{encode192.1} parent=0 // pred_check_branch
    %15 = sbr.rel (0) target = $region5
  $region4: #{encode192.1} parent=0 // pred_region
    _
  $region5: #{encode192.1} parent=0 // pred_fallthru
    _
  // Predicated region
  $region6: #{encode192.1} parent=0 // pred_check
    _
  $region7: #{encode192.1} parent=0 // pred_check_branch
    %17 = sbr.rel (0) target = $region9
  $region8: #{encode192.1} parent=0 // pred_region
    _
  $region9: #{encode192.1} parent=0 // pred_fallthru
    _
  // Predicated region
  $region10: #{encode192.1} parent=0 // pred_check
    _
  $region11: #{encode192.1} parent=0 // pred_check_branch
    %19 = sbr.rel (0) target = $region13
  $region12: #{encode192.1} parent=0 // pred_region
    _
  $region13: #{encode192.1} parent=0 // pred_fallthru
    _
  // Predicated region
  $region14: #{encode192.1} parent=0 // pred_check
    _
  $region15: #{encode192.1} parent=0 // pred_check_branch
    %21 = sbr.rel (0) target = $region17
  $region16: #{encode192.1} parent=0 // pred_region
    _
  $region17: #{encode192.1} parent=0 // pred_fallthru
    _
  // Predicated region
  $region18: #{encode192.1} parent=0 // pred_check
    _
  $region19: #{encode192.1} parent=0 // pred_check_branch
    %23 = sbr.rel (0) target = $region21
  $region20: #{encode192.1} parent=0 // pred_region
    _
  $region21: #{encode192.1} parent=0 // pred_fallthru
    _
  // Predicated region
  $region22: #{encode192.1} parent=0 // pred_check
    _
  $region23: #{encode192.1} parent=0 // pred_check_branch
    %25 = sbr.rel (0) target = $region25
  $region24: #{encode192.1} parent=0 // pred_region
    _
  $region25: #{encode192.1} parent=0 // pred_fallthru
    _
  // Predicated region
  $region26: #{encode192.1} parent=0 // pred_check
    _
  $region27: #{encode192.1} parent=0 // pred_check_branch
    %27 = sbr.rel (0) target = $region29
  $region28: #{encode192.1} parent=0 // pred_region
    _
  $region29: #{encode192.1} parent=0 // pred_fallthru
    _
  // Predicated region
  $region30: #{encode192.1} parent=0 // pred_check
    _
  $region31: #{encode192.1} parent=0 // pred_check_branch
    %29 = sbr.rel (0) target = $region33
  $region32: #{encode192.1} parent=0 // pred_region
    _
  $region33: #{encode192.1} parent=0 // pred_fallthru
    _
  // Predicated region
  $region34: #{encode192.1} parent=0 // pred_check
    _
  $region35: #{encode192.1} parent=0 // pred_check_branch
    %31 = sbr.rel (0) target = $region37
  $region36: #{encode192.1} parent=0 // pred_region
    _
  $region37: #{encode192.1} parent=0 // pred_fallthru
    _
  %v33 = vld [vmem:[%s0] sm:$0xf]
  %v34 = vld [vmem:[%s0 + $0x4] sm:$0xf]
  %v35 = vld [vmem:[%s0 + $0x8] sm:$0xf]
  %v36 = vld [vmem:[%s0 + $0xc] sm:$0xf]
  %v37 = vld [vmem:[%s0 + $0x10] sm:$0xf]
  %v38 = vld [vmem:[%s0 + $0x14] sm:$0xf]
  %v39 = vld [vmem:[%s0 + $0x18] sm:$0xf]
  %v40 = vld [vmem:[%s0 + $0x1c] sm:$0xf]
  %v41 = vld [vmem:[%s0 + $0x20] sm:$0xf]
  %v42 = vld [vmem:[%s0 + $0x24] sm:$0xf]
  %v43 = vld [vmem:[%s0 + $0x28] sm:$0xf]
  %v44 = vld [vmem:[%s0 + $0x2c] sm:$0xf]
  %v45 = vld [vmem:[%s0 + $0x30] sm:$0xf]
  %v46 = vld [vmem:[%s0 + $0x34] sm:$0xf]
  %v47 = vld [vmem:[%s0 + $0x38] sm:$0xf]
  %v48 = vld [vmem:[%s0 + $0x3c] sm:$0xf]
  %v49 = vld [vmem:[%s0 + $0x40] sm:$0xf]
  %v50 = vld [vmem:[%s0 + $0x44] sm:$0xf]
  %v51 = vld [vmem:[%s0 + $0x48] sm:$0xf]
  %v52 = vld [vmem:[%s0 + $0x4c] sm:$0xf]
  %v53 = vld [vmem:[%s0 + $0x50] sm:$0xf]
  %v54 = vld [vmem:[%s0 + $0x54] sm:$0xf]
  %v55 = vld [vmem:[%s0 + $0x58] sm:$0xf]
  %v56 = vld [vmem:[%s0 + $0x5c] sm:$0xf]
  %s57 = scalar_lea.vmem %s0, 96
  %v58 = vld [vmem:[%s57] sm:$0xf]
  %v59 = vld [vmem:[%s57 + $0x4] sm:$0xf]
  %v60 = vld [vmem:[%s57 + $0x8] sm:$0xf]
  %v61 = vld [vmem:[%s57 + $0xc] sm:$0xf]
  %v62 = vld [vmem:[%s57 + $0x10] sm:$0xf]
  %v63 = vld [vmem:[%s57 + $0x14] sm:$0xf]
  %v64 = vld [vmem:[%s57 + $0x18] sm:$0xf]
  %v65 = vld [vmem:[%s57 + $0x1c] sm:$0xf]
  %v66 = vld [vmem:[%s57 + $0x20] sm:$0xf]
  %v67 = vld [vmem:[%s57 + $0x24] sm:$0xf]
  %v68 = vld [vmem:[%s57 + $0x28] sm:$0xf]
  %v69 = vld [vmem:[%s57 + $0x2c] sm:$0xf]
  %v70 = vld [vmem:[%s57 + $0x30] sm:$0xf]
  %v71 = vld [vmem:[%s57 + $0x34] sm:$0xf]
  %v72 = vld [vmem:[%s57 + $0x38] sm:$0xf]
  %v73 = vld [vmem:[%s57 + $0x3c] sm:$0xf]
  %v74 = vld [vmem:[%s57 + $0x40] sm:$0xf]
  %v75 = vld [vmem:[%s57 + $0x44] sm:$0xf]
  %v76 = vld [vmem:[%s57 + $0x48] sm:$0xf]
  %v77 = vld [vmem:[%s57 + $0x4c] sm:$0xf]
  %v78 = vld [vmem:[%s57 + $0x50] sm:$0xf]
  %v79 = vld [vmem:[%s57 + $0x54] sm:$0xf]
  %v80 = vld [vmem:[%s57 + $0x58] sm:$0xf]
  %v81 = vld [vmem:[%s57 + $0x5c] sm:$0xf]
  %s82 = scalar_lea.vmem %s0, 192
  %v83 = vld [vmem:[%s82] sm:$0xf]
  %v84 = vld [vmem:[%s82 + $0x4] sm:$0xf]
  %v85 = vld [vmem:[%s82 + $0x8] sm:$0xf]
  %v86 = vld [vmem:[%s82 + $0xc] sm:$0xf]
  %v87 = vld [vmem:[%s82 + $0x10] sm:$0xf]
  %v88 = vld [vmem:[%s82 + $0x14] sm:$0xf]
  %v89 = vld [vmem:[%s82 + $0x18] sm:$0xf]
  %v90 = vld [vmem:[%s82 + $0x1c] sm:$0xf]
  %v91 = vld [vmem:[%s82 + $0x20] sm:$0xf]
  %v92 = vld [vmem:[%s82 + $0x24] sm:$0xf]
  %v93 = vld [vmem:[%s82 + $0x28] sm:$0xf]
  %v94 = vld [vmem:[%s82 + $0x2c] sm:$0xf]
  %v95 = vld [vmem:[%s82 + $0x30] sm:$0xf]
  %v96 = vld [vmem:[%s82 + $0x34] sm:$0xf]
  %v97 = vld [vmem:[%s82 + $0x38] sm:$0xf]
  %v98 = vld [vmem:[%s82 + $0x3c] sm:$0xf]
  %v99 = vld [vmem:[%s82 + $0x40] sm:$0xf]
  %v100 = vld [vmem:[%s82 + $0x44] sm:$0xf]
  %v101 = vld [vmem:[%s82 + $0x48] sm:$0xf]
  %v102 = vld [vmem:[%s82 + $0x4c] sm:$0xf]
  %v103 = vld [vmem:[%s82 + $0x50] sm:$0xf]
  %v104 = vld [vmem:[%s82 + $0x54] sm:$0xf]
  %v105 = vld [vmem:[%s82 + $0x58] sm:$0xf]
  %v106 = vld [vmem:[%s82 + $0x5c] sm:$0xf]
  %s107 = scalar_lea.vmem %s0, 288
  %v108 = vld [vmem:[%s107] sm:$0xf]
  %v109 = vld [vmem:[%s107 + $0x4] sm:$0xf]
  %v110 = vld [vmem:[%s107 + $0x8] sm:$0xf]
  %v111 = vld [vmem:[%s107 + $0xc] sm:$0xf]
  %v112 = vld [vmem:[%s107 + $0x10] sm:$0xf]
  %v113 = vld [vmem:[%s107 + $0x14] sm:$0xf]
  %v114 = vld [vmem:[%s107 + $0x18] sm:$0xf]
  %v115 = vld [vmem:[%s107 + $0x1c] sm:$0xf]
  %v116 = vld [vmem:[%s107 + $0x20] sm:$0xf]
  %v117 = vld [vmem:[%s107 + $0x24] sm:$0xf]
  %v118 = vld [vmem:[%s107 + $0x28] sm:$0xf]
  %v119 = vld [vmem:[%s107 + $0x2c] sm:$0xf]
  %v120 = vld [vmem:[%s107 + $0x30] sm:$0xf]
  %v121 = vld [vmem:[%s107 + $0x34] sm:$0xf]
  %v122 = vld [vmem:[%s107 + $0x38] sm:$0xf]
  %v123 = vld [vmem:[%s107 + $0x3c] sm:$0xf]
  %v124 = vld [vmem:[%s107 + $0x40] sm:$0xf]
  %v125 = vld [vmem:[%s107 + $0x44] sm:$0xf]
  %v126 = vld [vmem:[%s107 + $0x48] sm:$0xf]
  %v127 = vld [vmem:[%s107 + $0x4c] sm:$0xf]
  %v128 = vld [vmem:[%s107 + $0x50] sm:$0xf]
  %v129 = vld [vmem:[%s107 + $0x54] sm:$0xf]
  %v130 = vld [vmem:[%s107 + $0x58] sm:$0xf]
  %v131 = vld [vmem:[%s107 + $0x5c] sm:$0xf]
  %s132 = scalar_lea.vmem %s0, 384
  %v133 = vld [vmem:[%s132] sm:$0xf]
  %v134 = vld [vmem:[%s132 + $0x4] sm:$0xf]
  %v135 = vld [vmem:[%s132 + $0x8] sm:$0xf]
  %v136 = vld [vmem:[%s132 + $0xc] sm:$0xf]
  %v137 = vld [vmem:[%s132 + $0x10] sm:$0xf]
  %v138 = vld [vmem:[%s132 + $0x14] sm:$0xf]
  %v139 = vld [vmem:[%s132 + $0x18] sm:$0xf]
  %v140 = vld [vmem:[%s132 + $0x1c] sm:$0xf]
  %v141 = vld [vmem:[%s132 + $0x20] sm:$0xf]
  %v142 = vld [vmem:[%s132 + $0x24] sm:$0xf]
  %v143 = vld [vmem:[%s132 + $0x28] sm:$0xf]
  %v144 = vld [vmem:[%s132 + $0x2c] sm:$0xf]
  %v145 = vld [vmem:[%s132 + $0x30] sm:$0xf]
  %v146 = vld [vmem:[%s132 + $0x34] sm:$0xf]
  %v147 = vld [vmem:[%s132 + $0x38] sm:$0xf]
  %v148 = vld [vmem:[%s132 + $0x3c] sm:$0xf]
  %v149 = vld [vmem:[%s132 + $0x40] sm:$0xf]
  %v150 = vld [vmem:[%s132 + $0x44] sm:$0xf]
  %v151 = vld [vmem:[%s132 + $0x48] sm:$0xf]
  %v152 = vld [vmem:[%s132 + $0x4c] sm:$0xf]
  %v153 = vld [vmem:[%s132 + $0x50] sm:$0xf]
  %v154 = vld [vmem:[%s132 + $0x54] sm:$0xf]
  %v155 = vld [vmem:[%s132 + $0x58] sm:$0xf]
  %v156 = vld [vmem:[%s132 + $0x5c] sm:$0xf]
  %s157 = scalar_lea.vmem %s0, 480
  %v158 = vld [vmem:[%s157] sm:$0xf]
  %v159 = vld [vmem:[%s157 + $0x4] sm:$0xf]
  %v160 = vld [vmem:[%s157 + $0x8] sm:$0xf]
  %v161 = vld [vmem:[%s157 + $0xc] sm:$0xf]
  %v162 = vld [vmem:[%s157 + $0x10] sm:$0xf]
  %v163 = vld [vmem:[%s157 + $0x14] sm:$0xf]
  %v164 = vld [vmem:[%s157 + $0x18] sm:$0xf]
  %v165 = vld [vmem:[%s157 + $0x1c] sm:$0xf]
  %v166 = vld [vmem:[%s157 + $0x20] sm:$0xf]
  %v167 = vld [vmem:[%s157 + $0x24] sm:$0xf]
  %v168 = vld [vmem:[%s157 + $0x28] sm:$0xf]
  %v169 = vld [vmem:[%s157 + $0x2c] sm:$0xf]
  %v170 = vld [vmem:[%s157 + $0x30] sm:$0xf]
  %v171 = vld [vmem:[%s157 + $0x34] sm:$0xf]
  %v172 = vld [vmem:[%s157 + $0x38] sm:$0xf]
  %v173 = vld [vmem:[%s157 + $0x3c] sm:$0xf]
  %v174 = vld [vmem:[%s157 + $0x40] sm:$0xf]
  %v175 = vld [vmem:[%s157 + $0x44] sm:$0xf]
  %v176 = vld [vmem:[%s157 + $0x48] sm:$0xf]
  %v177 = vld [vmem:[%s157 + $0x4c] sm:$0xf]
  %v178 = vld [vmem:[%s157 + $0x50] sm:$0xf]
  %v179 = vld [vmem:[%s157 + $0x54] sm:$0xf]
  %v180 = vld [vmem:[%s157 + $0x58] sm:$0xf]
  %v181 = vld [vmem:[%s157 + $0x5c] sm:$0xf]
  %s182 = scalar_lea.vmem %s0, 576
  %v183 = vld [vmem:[%s182] sm:$0xf]
  %v184 = vld [vmem:[%s182 + $0x4] sm:$0xf]
  %v185 = vld [vmem:[%s182 + $0x8] sm:$0xf]
  %v186 = vld [vmem:[%s182 + $0xc] sm:$0xf]
  %v187 = vld [vmem:[%s182 + $0x10] sm:$0xf]
  %v188 = vld [vmem:[%s182 + $0x14] sm:$0xf]
  %v189 = vld [vmem:[%s182 + $0x18] sm:$0xf]
  %v190 = vld [vmem:[%s182 + $0x1c] sm:$0xf]
  %v191 = vld [vmem:[%s182 + $0x20] sm:$0xf]
  %v192 = vld [vmem:[%s182 + $0x24] sm:$0xf]
  %v193 = vld [vmem:[%s182 + $0x28] sm:$0xf]
  %v194 = vld [vmem:[%s182 + $0x2c] sm:$0xf]
  %v195 = vld [vmem:[%s182 + $0x30] sm:$0xf]
  %v196 = vld [vmem:[%s182 + $0x34] sm:$0xf]
  %v197 = vld [vmem:[%s182 + $0x38] sm:$0xf]
  %v198 = vld [vmem:[%s182 + $0x3c] sm:$0xf]
  %v199 = vld [vmem:[%s182 + $0x40] sm:$0xf]
  %v200 = vld [vmem:[%s182 + $0x44] sm:$0xf]
  %v201 = vld [vmem:[%s182 + $0x48] sm:$0xf]
  %v202 = vld [vmem:[%s182 + $0x4c] sm:$0xf]
  %v203 = vld [vmem:[%s182 + $0x50] sm:$0xf]
  %v204 = vld [vmem:[%s182 + $0x54] sm:$0xf]
  %v205 = vld [vmem:[%s182 + $0x58] sm:$0xf]
  %v206 = vld [vmem:[%s182 + $0x5c] sm:$0xf]
  %s207 = scalar_lea.vmem %s0, 672
  %v208 = vld [vmem:[%s207] sm:$0xf]
  %v209 = vld [vmem:[%s207 + $0x4] sm:$0xf]
  %v210 = vld [vmem:[%s207 + $0x8] sm:$0xf]
  %v211 = vld [vmem:[%s207 + $0xc] sm:$0xf]
  %v212 = vld [vmem:[%s207 + $0x10] sm:$0xf]
  %v213 = vld [vmem:[%s207 + $0x14] sm:$0xf]
  %v214 = vld [vmem:[%s207 + $0x18] sm:$0xf]
  %v215 = vld [vmem:[%s207 + $0x1c] sm:$0xf]
  %v216 = vld [vmem:[%s207 + $0x20] sm:$0xf]
  %v217 = vld [vmem:[%s207 + $0x24] sm:$0xf]
  %v218 = vld [vmem:[%s207 + $0x28] sm:$0xf]
  %v219 = vld [vmem:[%s207 + $0x2c] sm:$0xf]
  %v220 = vld [vmem:[%s207 + $0x30] sm:$0xf]
  %v221 = vld [vmem:[%s207 + $0x34] sm:$0xf]
  %v222 = vld [vmem:[%s207 + $0x38] sm:$0xf]
  %v223 = vld [vmem:[%s207 + $0x3c] sm:$0xf]
  %v224 = vld [vmem:[%s207 + $0x40] sm:$0xf]
  %v225 = vld [vmem:[%s207 + $0x44] sm:$0xf]
  %v226 = vld [vmem:[%s207 + $0x48] sm:$0xf]
  %v227 = vld [vmem:[%s207 + $0x4c] sm:$0xf]
  %v228 = vld [vmem:[%s207 + $0x50] sm:$0xf]
  %v229 = vld [vmem:[%s207 + $0x54] sm:$0xf]
  %v230 = vld [vmem:[%s207 + $0x58] sm:$0xf]
  %v231 = vld [vmem:[%s207 + $0x5c] sm:$0xf]
  %s232 = scalar_lea.vmem %s0, 768
  %v233 = vld [vmem:[%s232] sm:$0xf]
  %v234 = vld [vmem:[%s232 + $0x4] sm:$0xf]
  %v235 = vld [vmem:[%s232 + $0x8] sm:$0xf]
  %v236 = vld [vmem:[%s232 + $0xc] sm:$0xf]
  %v237 = vld [vmem:[%s232 + $0x10] sm:$0xf]
  %v238 = vld [vmem:[%s232 + $0x14] sm:$0xf]
  %v239 = vld [vmem:[%s232 + $0x18] sm:$0xf]
  %v240 = vld [vmem:[%s232 + $0x1c] sm:$0xf]
  %v241 = vld [vmem:[%s232 + $0x20] sm:$0xf]
  %v242 = vld [vmem:[%s232 + $0x24] sm:$0xf]
  %v243 = vld [vmem:[%s232 + $0x28] sm:$0xf]
  %v244 = vld [vmem:[%s232 + $0x2c] sm:$0xf]
  %v245 = vld [vmem:[%s232 + $0x30] sm:$0xf]
  %v246 = vld [vmem:[%s232 + $0x34] sm:$0xf]
  %v247 = vld [vmem:[%s232 + $0x38] sm:$0xf]
  %v248 = vld [vmem:[%s232 + $0x3c] sm:$0xf]
  %v249 = vld [vmem:[%s232 + $0x40] sm:$0xf]
  %v250 = vld [vmem:[%s232 + $0x44] sm:$0xf]
  %v251 = vld [vmem:[%s232 + $0x48] sm:$0xf]
  %v252 = vld [vmem:[%s232 + $0x4c] sm:$0xf]
  %v253 = vld [vmem:[%s232 + $0x50] sm:$0xf]
  %v254 = vld [vmem:[%s232 + $0x54] sm:$0xf]
  %v255 = vld [vmem:[%s232 + $0x58] sm:$0xf]
  %v256 = vld [vmem:[%s232 + $0x5c] sm:$0xf]
  %s257 = scalar_lea.vmem %s0, 864
  %v258 = vld [vmem:[%s257] sm:$0xf]
  %v259 = vld [vmem:[%s257 + $0x4] sm:$0xf]
  %v260 = vld [vmem:[%s257 + $0x8] sm:$0xf]
  %v261 = vld [vmem:[%s257 + $0xc] sm:$0xf]
  %v262 = vld [vmem:[%s257 + $0x10] sm:$0xf]
  %v263 = vld [vmem:[%s257 + $0x14] sm:$0xf]
  %v264 = vld [vmem:[%s257 + $0x18] sm:$0xf]
  %v265 = vld [vmem:[%s257 + $0x1c] sm:$0xf]
  %v266 = vld [vmem:[%s257 + $0x20] sm:$0xf]
  %v267 = vld [vmem:[%s257 + $0x24] sm:$0xf]
  %v268 = vld [vmem:[%s257 + $0x28] sm:$0xf]
  %v269 = vld [vmem:[%s257 + $0x2c] sm:$0xf]
  %v270 = vld [vmem:[%s257 + $0x30] sm:$0xf]
  %v271 = vld [vmem:[%s257 + $0x34] sm:$0xf]
  %v272 = vld [vmem:[%s257 + $0x38] sm:$0xf]
  %v273 = vld [vmem:[%s257 + $0x3c] sm:$0xf]
  %v274 = vld [vmem:[%s257 + $0x40] sm:$0xf]
  %v275 = vld [vmem:[%s257 + $0x44] sm:$0xf]
  %v276 = vld [vmem:[%s257 + $0x48] sm:$0xf]
  %v277 = vld [vmem:[%s257 + $0x4c] sm:$0xf]
  %v278 = vld [vmem:[%s257 + $0x50] sm:$0xf]
  %v279 = vld [vmem:[%s257 + $0x54] sm:$0xf]
  %v280 = vld [vmem:[%s257 + $0x58] sm:$0xf]
  %v281 = vld [vmem:[%s257 + $0x5c] sm:$0xf]
  %s282 = scalar_lea.vmem %s0, 960
  %v283 = vld [vmem:[%s282] sm:$0xf]
  %v284 = vld [vmem:[%s282 + $0x4] sm:$0xf]
  %v285 = vld [vmem:[%s282 + $0x8] sm:$0xf]
  %v286 = vld [vmem:[%s282 + $0xc] sm:$0xf]
  %v287 = vld [vmem:[%s282 + $0x10] sm:$0xf]
  %v288 = vld [vmem:[%s282 + $0x14] sm:$0xf]
  %v289 = vld [vmem:[%s282 + $0x18] sm:$0xf]
  %v290 = vld [vmem:[%s282 + $0x1c] sm:$0xf]
  %v291 = vld [vmem:[%s282 + $0x20] sm:$0xf]
  %v292 = vld [vmem:[%s282 + $0x24] sm:$0xf]
  %v293 = vld [vmem:[%s282 + $0x28] sm:$0xf]
  %v294 = vld [vmem:[%s282 + $0x2c] sm:$0xf]
  %v295 = vld [vmem:[%s282 + $0x30] sm:$0xf]
  %v296 = vld [vmem:[%s282 + $0x34] sm:$0xf]
  %v297 = vld [vmem:[%s282 + $0x38] sm:$0xf]
  %v298 = vld [vmem:[%s282 + $0x3c] sm:$0xf]
  %v299 = vld [vmem:[%s282 + $0x40] sm:$0xf]
  %v300 = vld [vmem:[%s282 + $0x44] sm:$0xf]
  %v301 = vld [vmem:[%s282 + $0x48] sm:$0xf]
  %v302 = vld [vmem:[%s282 + $0x4c] sm:$0xf]
  %v303 = vld [vmem:[%s282 + $0x50] sm:$0xf]
  %v304 = vld [vmem:[%s282 + $0x54] sm:$0xf]
  %v305 = vld [vmem:[%s282 + $0x58] sm:$0xf]
  %v306 = vld [vmem:[%s282 + $0x5c] sm:$0xf]
  %s307 = scalar_lea.vmem %s0, 1056
  %v308 = vld [vmem:[%s307] sm:$0xf]
  %v309 = vld [vmem:[%s307 + $0x4] sm:$0xf]
  %v310 = vld [vmem:[%s307 + $0x8] sm:$0xf]
  %v311 = vld [vmem:[%s307 + $0xc] sm:$0xf]
  %v312 = vld [vmem:[%s307 + $0x10] sm:$0xf]
  %v313 = vld [vmem:[%s307 + $0x14] sm:$0xf]
  %v314 = vld [vmem:[%s307 + $0x18] sm:$0xf]
  %v315 = vld [vmem:[%s307 + $0x1c] sm:$0xf]
  %v316 = vld [vmem:[%s307 + $0x20] sm:$0xf]
  %v317 = vld [vmem:[%s307 + $0x24] sm:$0xf]
  %v318 = vld [vmem:[%s307 + $0x28] sm:$0xf]
  %v319 = vld [vmem:[%s307 + $0x2c] sm:$0xf]
  %v320 = vld [vmem:[%s307 + $0x30] sm:$0xf]
  %v321 = vld [vmem:[%s307 + $0x34] sm:$0xf]
  %v322 = vld [vmem:[%s307 + $0x38] sm:$0xf]
  %v323 = vld [vmem:[%s307 + $0x3c] sm:$0xf]
  %v324 = vld [vmem:[%s307 + $0x40] sm:$0xf]
  %v325 = vld [vmem:[%s307 + $0x44] sm:$0xf]
  %v326 = vld [vmem:[%s307 + $0x48] sm:$0xf]
  %v327 = vld [vmem:[%s307 + $0x4c] sm:$0xf]
  %v328 = vld [vmem:[%s307 + $0x50] sm:$0xf]
  %v329 = vld [vmem:[%s307 + $0x54] sm:$0xf]
  %v330 = vld [vmem:[%s307 + $0x58] sm:$0xf]
  %v331 = vld [vmem:[%s307 + $0x5c] sm:$0xf]
  %s332 = scalar_lea.vmem %s0, 1152
  %v333 = vld [vmem:[%s332] sm:$0xf]
  %v334 = vld [vmem:[%s332 + $0x4] sm:$0xf]
  %v335 = vld [vmem:[%s332 + $0x8] sm:$0xf]
  %v336 = vld [vmem:[%s332 + $0xc] sm:$0xf]
  %v337 = vld [vmem:[%s332 + $0x10] sm:$0xf]
  %v338 = vld [vmem:[%s332 + $0x14] sm:$0xf]
  %v339 = vld [vmem:[%s332 + $0x18] sm:$0xf]
  %v340 = vld [vmem:[%s332 + $0x1c] sm:$0xf]
  %v341 = vld [vmem:[%s332 + $0x20] sm:$0xf]
  %v342 = vld [vmem:[%s332 + $0x24] sm:$0xf]
  %v343 = vld [vmem:[%s332 + $0x28] sm:$0xf]
  %v344 = vld [vmem:[%s332 + $0x2c] sm:$0xf]
  %v345 = vld [vmem:[%s332 + $0x30] sm:$0xf]
  %v346 = vld [vmem:[%s332 + $0x34] sm:$0xf]
  %v347 = vld [vmem:[%s332 + $0x38] sm:$0xf]
  %v348 = vld [vmem:[%s332 + $0x3c] sm:$0xf]
  %v349 = vld [vmem:[%s332 + $0x40] sm:$0xf]
  %v350 = vld [vmem:[%s332 + $0x44] sm:$0xf]
  %v351 = vld [vmem:[%s332 + $0x48] sm:$0xf]
  %v352 = vld [vmem:[%s332 + $0x4c] sm:$0xf]
  %v353 = vld [vmem:[%s332 + $0x50] sm:$0xf]
  %v354 = vld [vmem:[%s332 + $0x54] sm:$0xf]
  %v355 = vld [vmem:[%s332 + $0x58] sm:$0xf]
  %v356 = vld [vmem:[%s332 + $0x5c] sm:$0xf]
  %s357 = scalar_lea.vmem %s0, 1248
  %v358 = vld [vmem:[%s357] sm:$0xf]
  %v359 = vld [vmem:[%s357 + $0x4] sm:$0xf]
  %v360 = vld [vmem:[%s357 + $0x8] sm:$0xf]
  %v361 = vld [vmem:[%s357 + $0xc] sm:$0xf]
  %v362 = vld [vmem:[%s357 + $0x10] sm:$0xf]
  %v363 = vld [vmem:[%s357 + $0x14] sm:$0xf]
  %v364 = vld [vmem:[%s357 + $0x18] sm:$0xf]
  %v365 = vld [vmem:[%s357 + $0x1c] sm:$0xf]
  %v366 = vld [vmem:[%s357 + $0x20] sm:$0xf]
  %v367 = vld [vmem:[%s357 + $0x24] sm:$0xf]
  %v368 = vld [vmem:[%s357 + $0x28] sm:$0xf]
  %v369 = vld [vmem:[%s357 + $0x2c] sm:$0xf]
  %v370 = vld [vmem:[%s357 + $0x30] sm:$0xf]
  %v371 = vld [vmem:[%s357 + $0x34] sm:$0xf]
  %v372 = vld [vmem:[%s357 + $0x38] sm:$0xf]
  %v373 = vld [vmem:[%s357 + $0x3c] sm:$0xf]
  %v374 = vld [vmem:[%s357 + $0x40] sm:$0xf]
  %v375 = vld [vmem:[%s357 + $0x44] sm:$0xf]
  %v376 = vld [vmem:[%s357 + $0x48] sm:$0xf]
  %v377 = vld [vmem:[%s357 + $0x4c] sm:$0xf]
  %v378 = vld [vmem:[%s357 + $0x50] sm:$0xf]
  %v379 = vld [vmem:[%s357 + $0x54] sm:$0xf]
  %v380 = vld [vmem:[%s357 + $0x58] sm:$0xf]
  %v381 = vld [vmem:[%s357 + $0x5c] sm:$0xf]
  %s382 = scalar_lea.vmem %s0, 1344
  %v383 = vld [vmem:[%s382] sm:$0xf]
  %v384 = vld [vmem:[%s382 + $0x4] sm:$0xf]
  %v385 = vld [vmem:[%s382 + $0x8] sm:$0xf]
  %v386 = vld [vmem:[%s382 + $0xc] sm:$0xf]
  %v387 = vld [vmem:[%s382 + $0x10] sm:$0xf]
  %v388 = vld [vmem:[%s382 + $0x14] sm:$0xf]
  %v389 = vld [vmem:[%s382 + $0x18] sm:$0xf]
  %v390 = vld [vmem:[%s382 + $0x1c] sm:$0xf]
  %v391 = vld [vmem:[%s382 + $0x20] sm:$0xf]
  %v392 = vld [vmem:[%s382 + $0x24] sm:$0xf]
  %v393 = vld [vmem:[%s382 + $0x28] sm:$0xf]
  %v394 = vld [vmem:[%s382 + $0x2c] sm:$0xf]
  %v395 = vld [vmem:[%s382 + $0x30] sm:$0xf]
  %v396 = vld [vmem:[%s382 + $0x34] sm:$0xf]
  %v397 = vld [vmem:[%s382 + $0x38] sm:$0xf]
  %v398 = vld [vmem:[%s382 + $0x3c] sm:$0xf]
  %v399 = vld [vmem:[%s382 + $0x40] sm:$0xf]
  %v400 = vld [vmem:[%s382 + $0x44] sm:$0xf]
  %v401 = vld [vmem:[%s382 + $0x48] sm:$0xf]
  %v402 = vld [vmem:[%s382 + $0x4c] sm:$0xf]
  %v403 = vld [vmem:[%s382 + $0x50] sm:$0xf]
  %v404 = vld [vmem:[%s382 + $0x54] sm:$0xf]
  %v405 = vld [vmem:[%s382 + $0x58] sm:$0xf]
  %v406 = vld [vmem:[%s382 + $0x5c] sm:$0xf]
  %s407 = scalar_lea.vmem %s0, 1440
  %v408 = vld [vmem:[%s407] sm:$0xf]
  %v409 = vld [vmem:[%s407 + $0x4] sm:$0xf]
  %v410 = vld [vmem:[%s407 + $0x8] sm:$0xf]
  %v411 = vld [vmem:[%s407 + $0xc] sm:$0xf]
  %v412 = vld [vmem:[%s407 + $0x10] sm:$0xf]
  %v413 = vld [vmem:[%s407 + $0x14] sm:$0xf]
  %v414 = vld [vmem:[%s407 + $0x18] sm:$0xf]
  %v415 = vld [vmem:[%s407 + $0x1c] sm:$0xf]
  %v416 = vld [vmem:[%s407 + $0x20] sm:$0xf]
  %v417 = vld [vmem:[%s407 + $0x24] sm:$0xf]
  %v418 = vld [vmem:[%s407 + $0x28] sm:$0xf]
  %v419 = vld [vmem:[%s407 + $0x2c] sm:$0xf]
  %v420 = vld [vmem:[%s407 + $0x30] sm:$0xf]
  %v421 = vld [vmem:[%s407 + $0x34] sm:$0xf]
  %v422 = vld [vmem:[%s407 + $0x38] sm:$0xf]
  %v423 = vld [vmem:[%s407 + $0x3c] sm:$0xf]
  %v424 = vld [vmem:[%s407 + $0x40] sm:$0xf]
  %v425 = vld [vmem:[%s407 + $0x44] sm:$0xf]
  %v426 = vld [vmem:[%s407 + $0x48] sm:$0xf]
  %v427 = vld [vmem:[%s407 + $0x4c] sm:$0xf]
  %v428 = vld [vmem:[%s407 + $0x50] sm:$0xf]
  %v429 = vld [vmem:[%s407 + $0x54] sm:$0xf]
  %v430 = vld [vmem:[%s407 + $0x58] sm:$0xf]
  %v431 = vld [vmem:[%s407 + $0x5c] sm:$0xf]
  %v456 = vunpack.c.l.b16 %v58
  %v457 = vunpack.c.l.b16 %v59
  %v458 = vunpack.c.l.b16 %v60
  %v459 = vunpack.c.l.b16 %v61
  %v460 = vunpack.c.l.b16 %v62
  %v461 = vunpack.c.l.b16 %v63
  %v462 = vunpack.c.l.b16 %v64
  %v463 = vunpack.c.l.b16 %v65
  %v464 = vunpack.c.l.b16 %v66
  %v465 = vunpack.c.l.b16 %v67
  %v466 = vunpack.c.l.b16 %v68
  %v467 = vunpack.c.l.b16 %v69
  %v468 = vunpack.c.l.b16 %v70
  %v469 = vunpack.c.l.b16 %v71
  %v470 = vunpack.c.l.b16 %v72
  %v471 = vunpack.c.l.b16 %v73
  %v472 = vunpack.c.l.b16 %v74
  %v473 = vunpack.c.l.b16 %v75
  %v474 = vunpack.c.l.b16 %v76
  %v475 = vunpack.c.l.b16 %v77
  %v476 = vunpack.c.l.b16 %v78
  %v477 = vunpack.c.l.b16 %v79
  %v478 = vunpack.c.l.b16 %v80
  %v479 = vunpack.c.l.b16 %v81
  %v480 = vpack.c.b16 %v457, %v456
  %v481 = vpack.c.b16 %v459, %v458
  %v482 = vpack.c.b16 %v461, %v460
  %v483 = vpack.c.b16 %v463, %v462
  %v484 = vpack.c.b16 %v465, %v464
  %v485 = vpack.c.b16 %v467, %v466
  %v486 = vpack.c.b16 %v469, %v468
  %v487 = vpack.c.b16 %v471, %v470
  %v488 = vpack.c.b16 %v473, %v472
  %v489 = vpack.c.b16 %v475, %v474
  %v490 = vpack.c.b16 %v477, %v476
  %v491 = vpack.c.b16 %v479, %v478
  %492 = vrot.lane.b32.xlu0 %v480, 2
  %v493 = vpop.permute.xlu0 %492
  %494 = vrot.lane.b32.xlu0 %v481, 2
  %v495 = vpop.permute.xlu0 %494
  %496 = vrot.lane.b32.xlu0 %v482, 2
  %v497 = vpop.permute.xlu0 %496
  %498 = vrot.lane.b32.xlu0 %v483, 2
  %v499 = vpop.permute.xlu0 %498
  %500 = vrot.lane.b32.xlu0 %v484, 2
  %v501 = vpop.permute.xlu0 %500
  %502 = vrot.lane.b32.xlu0 %v485, 2
  %v503 = vpop.permute.xlu0 %502
  %504 = vrot.lane.b32.xlu0 %v486, 2
  %v505 = vpop.permute.xlu0 %504
  %506 = vrot.lane.b32.xlu0 %v487, 2
  %v507 = vpop.permute.xlu0 %506
  %508 = vrot.lane.b32.xlu0 %v488, 2
  %v509 = vpop.permute.xlu0 %508
  %510 = vrot.lane.b32.xlu0 %v489, 2
  %v511 = vpop.permute.xlu0 %510
  %512 = vrot.lane.b32.xlu0 %v490, 2
  %v513 = vpop.permute.xlu0 %512
  %514 = vrot.lane.b32.xlu0 %v491, 2
  %v515 = vpop.permute.xlu0 %514
  %v540 = vunpack.c.l.b16 %v108
  %v541 = vunpack.c.l.b16 %v109
  %v542 = vunpack.c.l.b16 %v110
  %v543 = vunpack.c.l.b16 %v111
  %v544 = vunpack.c.l.b16 %v112
  %v545 = vunpack.c.l.b16 %v113
  %v546 = vunpack.c.l.b16 %v114
  %v547 = vunpack.c.l.b16 %v115
  %v548 = vunpack.c.l.b16 %v116
  %v549 = vunpack.c.l.b16 %v117
  %v550 = vunpack.c.l.b16 %v118
  %v551 = vunpack.c.l.b16 %v119
  %v552 = vunpack.c.l.b16 %v120
  %v553 = vunpack.c.l.b16 %v121
  %v554 = vunpack.c.l.b16 %v122
  %v555 = vunpack.c.l.b16 %v123
  %v556 = vunpack.c.l.b16 %v124
  %v557 = vunpack.c.l.b16 %v125
  %v558 = vunpack.c.l.b16 %v126
  %v559 = vunpack.c.l.b16 %v127
  %v560 = vunpack.c.l.b16 %v128
  %v561 = vunpack.c.l.b16 %v129
  %v562 = vunpack.c.l.b16 %v130
  %v563 = vunpack.c.l.b16 %v131
  %v564 = vpack.c.b16 %v541, %v540
  %v565 = vpack.c.b16 %v543, %v542
  %v566 = vpack.c.b16 %v545, %v544
  %v567 = vpack.c.b16 %v547, %v546
  %v568 = vpack.c.b16 %v549, %v548
  %v569 = vpack.c.b16 %v551, %v550
  %v570 = vpack.c.b16 %v553, %v552
  %v571 = vpack.c.b16 %v555, %v554
  %v572 = vpack.c.b16 %v557, %v556
  %v573 = vpack.c.b16 %v559, %v558
  %v574 = vpack.c.b16 %v561, %v560
  %v575 = vpack.c.b16 %v563, %v562
  %576 = vrot.lane.b32.xlu0 %v564, 4
  %v577 = vpop.permute.xlu0 %576
  %578 = vrot.lane.b32.xlu0 %v565, 4
  %v579 = vpop.permute.xlu0 %578
  %580 = vrot.lane.b32.xlu0 %v566, 4
  %v581 = vpop.permute.xlu0 %580
  %582 = vrot.lane.b32.xlu0 %v567, 4
  %v583 = vpop.permute.xlu0 %582
  %584 = vrot.lane.b32.xlu0 %v568, 4
  %v585 = vpop.permute.xlu0 %584
  %586 = vrot.lane.b32.xlu0 %v569, 4
  %v587 = vpop.permute.xlu0 %586
  %588 = vrot.lane.b32.xlu0 %v570, 4
  %v589 = vpop.permute.xlu0 %588
  %590 = vrot.lane.b32.xlu0 %v571, 4
  %v591 = vpop.permute.xlu0 %590
  %592 = vrot.lane.b32.xlu0 %v572, 4
  %v593 = vpop.permute.xlu0 %592
  %594 = vrot.lane.b32.xlu0 %v573, 4
  %v595 = vpop.permute.xlu0 %594
  %596 = vrot.lane.b32.xlu0 %v574, 4
  %v597 = vpop.permute.xlu0 %596
  %598 = vrot.lane.b32.xlu0 %v575, 4
  %v599 = vpop.permute.xlu0 %598
  %v624 = vunpack.c.l.b16 %v158
  %v625 = vunpack.c.l.b16 %v159
  %v626 = vunpack.c.l.b16 %v160
  %v627 = vunpack.c.l.b16 %v161
  %v628 = vunpack.c.l.b16 %v162
  %v629 = vunpack.c.l.b16 %v163
  %v630 = vunpack.c.l.b16 %v164
  %v631 = vunpack.c.l.b16 %v165
  %v632 = vunpack.c.l.b16 %v166
  %v633 = vunpack.c.l.b16 %v167
  %v634 = vunpack.c.l.b16 %v168
  %v635 = vunpack.c.l.b16 %v169
  %v636 = vunpack.c.l.b16 %v170
  %v637 = vunpack.c.l.b16 %v171
  %v638 = vunpack.c.l.b16 %v172
  %v639 = vunpack.c.l.b16 %v173
  %v640 = vunpack.c.l.b16 %v174
  %v641 = vunpack.c.l.b16 %v175
  %v642 = vunpack.c.l.b16 %v176
  %v643 = vunpack.c.l.b16 %v177
  %v644 = vunpack.c.l.b16 %v178
  %v645 = vunpack.c.l.b16 %v179
  %v646 = vunpack.c.l.b16 %v180
  %v647 = vunpack.c.l.b16 %v181
  %v648 = vpack.c.b16 %v625, %v624
  %v649 = vpack.c.b16 %v627, %v626
  %v650 = vpack.c.b16 %v629, %v628
  %v651 = vpack.c.b16 %v631, %v630
  %v652 = vpack.c.b16 %v633, %v632
  %v653 = vpack.c.b16 %v635, %v634
  %v654 = vpack.c.b16 %v637, %v636
  %v655 = vpack.c.b16 %v639, %v638
  %v656 = vpack.c.b16 %v641, %v640
  %v657 = vpack.c.b16 %v643, %v642
  %v658 = vpack.c.b16 %v645, %v644
  %v659 = vpack.c.b16 %v647, %v646
  %660 = vrot.lane.b32.xlu0 %v648, 6
  %v661 = vpop.permute.xlu0 %660
  %662 = vrot.lane.b32.xlu0 %v649, 6
  %v663 = vpop.permute.xlu0 %662
  %664 = vrot.lane.b32.xlu0 %v650, 6
  %v665 = vpop.permute.xlu0 %664
  %666 = vrot.lane.b32.xlu0 %v651, 6
  %v667 = vpop.permute.xlu0 %666
  %668 = vrot.lane.b32.xlu0 %v652, 6
  %v669 = vpop.permute.xlu0 %668
  %670 = vrot.lane.b32.xlu0 %v653, 6
  %v671 = vpop.permute.xlu0 %670
  %672 = vrot.lane.b32.xlu0 %v654, 6
  %v673 = vpop.permute.xlu0 %672
  %674 = vrot.lane.b32.xlu0 %v655, 6
  %v675 = vpop.permute.xlu0 %674
  %676 = vrot.lane.b32.xlu0 %v656, 6
  %v677 = vpop.permute.xlu0 %676
  %678 = vrot.lane.b32.xlu0 %v657, 6
  %v679 = vpop.permute.xlu0 %678
  %680 = vrot.lane.b32.xlu0 %v658, 6
  %v681 = vpop.permute.xlu0 %680
  %682 = vrot.lane.b32.xlu0 %v659, 6
  %v683 = vpop.permute.xlu0 %682
  %v708 = vunpack.c.l.b16 %v208
  %v709 = vunpack.c.l.b16 %v209
  %v710 = vunpack.c.l.b16 %v210
  %v711 = vunpack.c.l.b16 %v211
  %v712 = vunpack.c.l.b16 %v212
  %v713 = vunpack.c.l.b16 %v213
  %v714 = vunpack.c.l.b16 %v214
  %v715 = vunpack.c.l.b16 %v215
  %v716 = vunpack.c.l.b16 %v216
  %v717 = vunpack.c.l.b16 %v217
  %v718 = vunpack.c.l.b16 %v218
  %v719 = vunpack.c.l.b16 %v219
  %v720 = vunpack.c.l.b16 %v220
  %v721 = vunpack.c.l.b16 %v221
  %v722 = vunpack.c.l.b16 %v222
  %v723 = vunpack.c.l.b16 %v223
  %v724 = vunpack.c.l.b16 %v224
  %v725 = vunpack.c.l.b16 %v225
  %v726 = vunpack.c.l.b16 %v226
  %v727 = vunpack.c.l.b16 %v227
  %v728 = vunpack.c.l.b16 %v228
  %v729 = vunpack.c.l.b16 %v229
  %v730 = vunpack.c.l.b16 %v230
  %v731 = vunpack.c.l.b16 %v231
  %v732 = vpack.c.b16 %v709, %v708
  %v733 = vpack.c.b16 %v711, %v710
  %v734 = vpack.c.b16 %v713, %v712
  %v735 = vpack.c.b16 %v715, %v714
  %v736 = vpack.c.b16 %v717, %v716
  %v737 = vpack.c.b16 %v719, %v718
  %v738 = vpack.c.b16 %v721, %v720
  %v739 = vpack.c.b16 %v723, %v722
  %v740 = vpack.c.b16 %v725, %v724
  %v741 = vpack.c.b16 %v727, %v726
  %v742 = vpack.c.b16 %v729, %v728
  %v743 = vpack.c.b16 %v731, %v730
  %744 = vrot.lane.b32.xlu0 %v732, 8
  %v745 = vpop.permute.xlu0 %744
  %746 = vrot.lane.b32.xlu0 %v733, 8
  %v747 = vpop.permute.xlu0 %746
  %748 = vrot.lane.b32.xlu0 %v734, 8
  %v749 = vpop.permute.xlu0 %748
  %750 = vrot.lane.b32.xlu0 %v735, 8
  %v751 = vpop.permute.xlu0 %750
  %752 = vrot.lane.b32.xlu0 %v736, 8
  %v753 = vpop.permute.xlu0 %752
  %754 = vrot.lane.b32.xlu0 %v737, 8
  %v755 = vpop.permute.xlu0 %754
  %756 = vrot.lane.b32.xlu0 %v738, 8
  %v757 = vpop.permute.xlu0 %756
  %758 = vrot.lane.b32.xlu0 %v739, 8
  %v759 = vpop.permute.xlu0 %758
  %760 = vrot.lane.b32.xlu0 %v740, 8
  %v761 = vpop.permute.xlu0 %760
  %762 = vrot.lane.b32.xlu0 %v741, 8
  %v763 = vpop.permute.xlu0 %762
  %764 = vrot.lane.b32.xlu0 %v742, 8
  %v765 = vpop.permute.xlu0 %764
  %766 = vrot.lane.b32.xlu0 %v743, 8
  %v767 = vpop.permute.xlu0 %766
  %v792 = vunpack.c.l.b16 %v258
  %v793 = vunpack.c.l.b16 %v259
  %v794 = vunpack.c.l.b16 %v260
  %v795 = vunpack.c.l.b16 %v261
  %v796 = vunpack.c.l.b16 %v262
  %v797 = vunpack.c.l.b16 %v263
  %v798 = vunpack.c.l.b16 %v264
  %v799 = vunpack.c.l.b16 %v265
  %v800 = vunpack.c.l.b16 %v266
  %v801 = vunpack.c.l.b16 %v267
  %v802 = vunpack.c.l.b16 %v268
  %v803 = vunpack.c.l.b16 %v269
  %v804 = vunpack.c.l.b16 %v270
  %v805 = vunpack.c.l.b16 %v271
  %v806 = vunpack.c.l.b16 %v272
  %v807 = vunpack.c.l.b16 %v273
  %v808 = vunpack.c.l.b16 %v274
  %v809 = vunpack.c.l.b16 %v275
  %v810 = vunpack.c.l.b16 %v276
  %v811 = vunpack.c.l.b16 %v277
  %v812 = vunpack.c.l.b16 %v278
  %v813 = vunpack.c.l.b16 %v279
  %v814 = vunpack.c.l.b16 %v280
  %v815 = vunpack.c.l.b16 %v281
  %v816 = vpack.c.b16 %v793, %v792
  %v817 = vpack.c.b16 %v795, %v794
  %v818 = vpack.c.b16 %v797, %v796
  %v819 = vpack.c.b16 %v799, %v798
  %v820 = vpack.c.b16 %v801, %v800
  %v821 = vpack.c.b16 %v803, %v802
  %v822 = vpack.c.b16 %v805, %v804
  %v823 = vpack.c.b16 %v807, %v806
  %v824 = vpack.c.b16 %v809, %v808
  %v825 = vpack.c.b16 %v811, %v810
  %v826 = vpack.c.b16 %v813, %v812
  %v827 = vpack.c.b16 %v815, %v814
  %828 = vrot.lane.b32.xlu0 %v816, 10
  %v829 = vpop.permute.xlu0 %828
  %830 = vrot.lane.b32.xlu0 %v817, 10
  %v831 = vpop.permute.xlu0 %830
  %832 = vrot.lane.b32.xlu0 %v818, 10
  %v833 = vpop.permute.xlu0 %832
  %834 = vrot.lane.b32.xlu0 %v819, 10
  %v835 = vpop.permute.xlu0 %834
  %836 = vrot.lane.b32.xlu0 %v820, 10
  %v837 = vpop.permute.xlu0 %836
  %838 = vrot.lane.b32.xlu0 %v821, 10
  %v839 = vpop.permute.xlu0 %838
  %840 = vrot.lane.b32.xlu0 %v822, 10
  %v841 = vpop.permute.xlu0 %840
  %842 = vrot.lane.b32.xlu0 %v823, 10
  %v843 = vpop.permute.xlu0 %842
  %844 = vrot.lane.b32.xlu0 %v824, 10
  %v845 = vpop.permute.xlu0 %844
  %846 = vrot.lane.b32.xlu0 %v825, 10
  %v847 = vpop.permute.xlu0 %846
  %848 = vrot.lane.b32.xlu0 %v826, 10
  %v849 = vpop.permute.xlu0 %848
  %850 = vrot.lane.b32.xlu0 %v827, 10
  %v851 = vpop.permute.xlu0 %850
  %v876 = vunpack.c.l.b16 %v308
  %v877 = vunpack.c.l.b16 %v309
  %v878 = vunpack.c.l.b16 %v310
  %v879 = vunpack.c.l.b16 %v311
  %v880 = vunpack.c.l.b16 %v312
  %v881 = vunpack.c.l.b16 %v313
  %v882 = vunpack.c.l.b16 %v314
  %v883 = vunpack.c.l.b16 %v315
  %v884 = vunpack.c.l.b16 %v316
  %v885 = vunpack.c.l.b16 %v317
  %v886 = vunpack.c.l.b16 %v318
  %v887 = vunpack.c.l.b16 %v319
  %v888 = vunpack.c.l.b16 %v320
  %v889 = vunpack.c.l.b16 %v321
  %v890 = vunpack.c.l.b16 %v322
  %v891 = vunpack.c.l.b16 %v323
  %v892 = vunpack.c.l.b16 %v324
  %v893 = vunpack.c.l.b16 %v325
  %v894 = vunpack.c.l.b16 %v326
  %v895 = vunpack.c.l.b16 %v327
  %v896 = vunpack.c.l.b16 %v328
  %v897 = vunpack.c.l.b16 %v329
  %v898 = vunpack.c.l.b16 %v330
  %v899 = vunpack.c.l.b16 %v331
  %v900 = vpack.c.b16 %v877, %v876
  %v901 = vpack.c.b16 %v879, %v878
  %v902 = vpack.c.b16 %v881, %v880
  %v903 = vpack.c.b16 %v883, %v882
  %v904 = vpack.c.b16 %v885, %v884
  %v905 = vpack.c.b16 %v887, %v886
  %v906 = vpack.c.b16 %v889, %v888
  %v907 = vpack.c.b16 %v891, %v890
  %v908 = vpack.c.b16 %v893, %v892
  %v909 = vpack.c.b16 %v895, %v894
  %v910 = vpack.c.b16 %v897, %v896
  %v911 = vpack.c.b16 %v899, %v898
  %912 = vrot.lane.b32.xlu0 %v900, 12
  %v913 = vpop.permute.xlu0 %912
  %914 = vrot.lane.b32.xlu0 %v901, 12
  %v915 = vpop.permute.xlu0 %914
  %916 = vrot.lane.b32.xlu0 %v902, 12
  %v917 = vpop.permute.xlu0 %916
  %918 = vrot.lane.b32.xlu0 %v903, 12
  %v919 = vpop.permute.xlu0 %918
  %920 = vrot.lane.b32.xlu0 %v904, 12
  %v921 = vpop.permute.xlu0 %920
  %922 = vrot.lane.b32.xlu0 %v905, 12
  %v923 = vpop.permute.xlu0 %922
  %924 = vrot.lane.b32.xlu0 %v906, 12
  %v925 = vpop.permute.xlu0 %924
  %926 = vrot.lane.b32.xlu0 %v907, 12
  %v927 = vpop.permute.xlu0 %926
  %928 = vrot.lane.b32.xlu0 %v908, 12
  %v929 = vpop.permute.xlu0 %928
  %930 = vrot.lane.b32.xlu0 %v909, 12
  %v931 = vpop.permute.xlu0 %930
  %932 = vrot.lane.b32.xlu0 %v910, 12
  %v933 = vpop.permute.xlu0 %932
  %934 = vrot.lane.b32.xlu0 %v911, 12
  %v935 = vpop.permute.xlu0 %934
  %v960 = vunpack.c.l.b16 %v358
  %v961 = vunpack.c.l.b16 %v359
  %v962 = vunpack.c.l.b16 %v360
  %v963 = vunpack.c.l.b16 %v361
  %v964 = vunpack.c.l.b16 %v362
  %v965 = vunpack.c.l.b16 %v363
  %v966 = vunpack.c.l.b16 %v364
  %v967 = vunpack.c.l.b16 %v365
  %v968 = vunpack.c.l.b16 %v366
  %v969 = vunpack.c.l.b16 %v367
  %v970 = vunpack.c.l.b16 %v368
  %v971 = vunpack.c.l.b16 %v369
  %v972 = vunpack.c.l.b16 %v370
  %v973 = vunpack.c.l.b16 %v371
  %v974 = vunpack.c.l.b16 %v372
  %v975 = vunpack.c.l.b16 %v373
  %v976 = vunpack.c.l.b16 %v374
  %v977 = vunpack.c.l.b16 %v375
  %v978 = vunpack.c.l.b16 %v376
  %v979 = vunpack.c.l.b16 %v377
  %v980 = vunpack.c.l.b16 %v378
  %v981 = vunpack.c.l.b16 %v379
  %v982 = vunpack.c.l.b16 %v380
  %v983 = vunpack.c.l.b16 %v381
  %v984 = vpack.c.b16 %v961, %v960
  %v985 = vpack.c.b16 %v963, %v962
  %v986 = vpack.c.b16 %v965, %v964
  %v987 = vpack.c.b16 %v967, %v966
  %v988 = vpack.c.b16 %v969, %v968
  %v989 = vpack.c.b16 %v971, %v970
  %v990 = vpack.c.b16 %v973, %v972
  %v991 = vpack.c.b16 %v975, %v974
  %v992 = vpack.c.b16 %v977, %v976
  %v993 = vpack.c.b16 %v979, %v978
  %v994 = vpack.c.b16 %v981, %v980
  %v995 = vpack.c.b16 %v983, %v982
  %996 = vrot.lane.b32.xlu0 %v984, 14
  %v997 = vpop.permute.xlu0 %996
  %998 = vrot.lane.b32.xlu0 %v985, 14
  %v999 = vpop.permute.xlu0 %998
  %1000 = vrot.lane.b32.xlu0 %v986, 14
  %v1001 = vpop.permute.xlu0 %1000
  %1002 = vrot.lane.b32.xlu0 %v987, 14
  %v1003 = vpop.permute.xlu0 %1002
  %1004 = vrot.lane.b32.xlu0 %v988, 14
  %v1005 = vpop.permute.xlu0 %1004
  %1006 = vrot.lane.b32.xlu0 %v989, 14
  %v1007 = vpop.permute.xlu0 %1006
  %1008 = vrot.lane.b32.xlu0 %v990, 14
  %v1009 = vpop.permute.xlu0 %1008
  %1010 = vrot.lane.b32.xlu0 %v991, 14
  %v1011 = vpop.permute.xlu0 %1010
  %1012 = vrot.lane.b32.xlu0 %v992, 14
  %v1013 = vpop.permute.xlu0 %1012
  %1014 = vrot.lane.b32.xlu0 %v993, 14
  %v1015 = vpop.permute.xlu0 %1014
  %1016 = vrot.lane.b32.xlu0 %v994, 14
  %v1017 = vpop.permute.xlu0 %1016
  %1018 = vrot.lane.b32.xlu0 %v995, 14
  %v1019 = vpop.permute.xlu0 %1018
  %v1044 = vunpack.c.l.b16 %v408
  %v1045 = vunpack.c.l.b16 %v409
  %v1046 = vunpack.c.l.b16 %v410
  %v1047 = vunpack.c.l.b16 %v411
  %v1048 = vunpack.c.l.b16 %v412
  %v1049 = vunpack.c.l.b16 %v413
  %v1050 = vunpack.c.l.b16 %v414
  %v1051 = vunpack.c.l.b16 %v415
  %v1052 = vunpack.c.l.b16 %v416
  %v1053 = vunpack.c.l.b16 %v417
  %v1054 = vunpack.c.l.b16 %v418
  %v1055 = vunpack.c.l.b16 %v419
  %v1056 = vunpack.c.l.b16 %v420
  %v1057 = vunpack.c.l.b16 %v421
  %v1058 = vunpack.c.l.b16 %v422
  %v1059 = vunpack.c.l.b16 %v423
  %v1060 = vunpack.c.l.b16 %v424
  %v1061 = vunpack.c.l.b16 %v425
  %v1062 = vunpack.c.l.b16 %v426
  %v1063 = vunpack.c.l.b16 %v427
  %v1064 = vunpack.c.l.b16 %v428
  %v1065 = vunpack.c.l.b16 %v429
  %v1066 = vunpack.c.l.b16 %v430
  %v1067 = vunpack.c.l.b16 %v431
  %v1068 = vpack.c.b16 %v1045, %v1044
  %v1069 = vpack.c.b16 %v1047, %v1046
  %v1070 = vpack.c.b16 %v1049, %v1048
  %v1071 = vpack.c.b16 %v1051, %v1050
  %v1072 = vpack.c.b16 %v1053, %v1052
  %v1073 = vpack.c.b16 %v1055, %v1054
  %v1074 = vpack.c.b16 %v1057, %v1056
  %v1075 = vpack.c.b16 %v1059, %v1058
  %v1076 = vpack.c.b16 %v1061, %v1060
  %v1077 = vpack.c.b16 %v1063, %v1062
  %v1078 = vpack.c.b16 %v1065, %v1064
  %v1079 = vpack.c.b16 %v1067, %v1066
  %1080 = vrot.lane.b32.xlu0 %v1068, 16
  %v1081 = vpop.permute.xlu0 %1080
  %1082 = vrot.lane.b32.xlu0 %v1069, 16
  %v1083 = vpop.permute.xlu0 %1082
  %1084 = vrot.lane.b32.xlu0 %v1070, 16
  %v1085 = vpop.permute.xlu0 %1084
  %1086 = vrot.lane.b32.xlu0 %v1071, 16
  %v1087 = vpop.permute.xlu0 %1086
  %1088 = vrot.lane.b32.xlu0 %v1072, 16
  %v1089 = vpop.permute.xlu0 %1088
  %1090 = vrot.lane.b32.xlu0 %v1073, 16
  %v1091 = vpop.permute.xlu0 %1090
  %1092 = vrot.lane.b32.xlu0 %v1074, 16
  %v1093 = vpop.permute.xlu0 %1092
  %1094 = vrot.lane.b32.xlu0 %v1075, 16
  %v1095 = vpop.permute.xlu0 %1094
  %1096 = vrot.lane.b32.xlu0 %v1076, 16
  %v1097 = vpop.permute.xlu0 %1096
  %1098 = vrot.lane.b32.xlu0 %v1077, 16
  %v1099 = vpop.permute.xlu0 %1098
  %1100 = vrot.lane.b32.xlu0 %v1078, 16
  %v1101 = vpop.permute.xlu0 %1100
  %1102 = vrot.lane.b32.xlu0 %v1079, 16
  %v1103 = vpop.permute.xlu0 %1102
  %vm1104 = vcmask 15360
  %v1107 = vsel %vm1104, 0, %v493
  %v1109 = vsel %vm1104, 0, %v495
  %v1111 = vsel %vm1104, 0, %v497
  %v1113 = vsel %vm1104, 0, %v499
  %v1115 = vsel %vm1104, 0, %v501
  %v1117 = vsel %vm1104, 0, %v503
  %v1119 = vsel %vm1104, 0, %v505
  %v1121 = vsel %vm1104, 0, %v507
  %v1123 = vsel %vm1104, 0, %v509
  %v1125 = vsel %vm1104, 0, %v511
  %v1127 = vsel %vm1104, 0, %v513
  %v1129 = vsel %vm1104, 0, %v515
  %vm1130 = vcmask 31744
  %v1132 = vsel %vm1130, %v1107, %v577
  %v1134 = vsel %vm1130, %v1109, %v579
  %v1136 = vsel %vm1130, %v1111, %v581
  %v1138 = vsel %vm1130, %v1113, %v583
  %v1140 = vsel %vm1130, %v1115, %v585
  %v1142 = vsel %vm1130, %v1117, %v587
  %v1144 = vsel %vm1130, %v1119, %v589
  %v1146 = vsel %vm1130, %v1121, %v591
  %v1148 = vsel %vm1130, %v1123, %v593
  %v1150 = vsel %vm1130, %v1125, %v595
  %v1152 = vsel %vm1130, %v1127, %v597
  %v1154 = vsel %vm1130, %v1129, %v599
  %vm1155 = vcmask 48128
  %v1157 = vsel %vm1155, %v1132, %v661
  %v1159 = vsel %vm1155, %v1134, %v663
  %v1161 = vsel %vm1155, %v1136, %v665
  %v1163 = vsel %vm1155, %v1138, %v667
  %v1165 = vsel %vm1155, %v1140, %v669
  %v1167 = vsel %vm1155, %v1142, %v671
  %v1169 = vsel %vm1155, %v1144, %v673
  %v1171 = vsel %vm1155, %v1146, %v675
  %v1173 = vsel %vm1155, %v1148, %v677
  %v1175 = vsel %vm1155, %v1150, %v679
  %v1177 = vsel %vm1155, %v1152, %v681
  %v1179 = vsel %vm1155, %v1154, %v683
  %vm1180 = vcmask 64512
  %v1182 = vsel %vm1180, %v1157, %v745
  %v1184 = vsel %vm1180, %v1159, %v747
  %v1186 = vsel %vm1180, %v1161, %v749
  %v1188 = vsel %vm1180, %v1163, %v751
  %v1190 = vsel %vm1180, %v1165, %v753
  %v1192 = vsel %vm1180, %v1167, %v755
  %v1194 = vsel %vm1180, %v1169, %v757
  %v1196 = vsel %vm1180, %v1171, %v759
  %v1198 = vsel %vm1180, %v1173, %v761
  %v1200 = vsel %vm1180, %v1175, %v763
  %v1202 = vsel %vm1180, %v1177, %v765
  %v1204 = vsel %vm1180, %v1179, %v767
  %vm1205 = vcmask 80896
  %v1207 = vsel %vm1205, %v1182, %v829
  %v1209 = vsel %vm1205, %v1184, %v831
  %v1211 = vsel %vm1205, %v1186, %v833
  %v1213 = vsel %vm1205, %v1188, %v835
  %v1215 = vsel %vm1205, %v1190, %v837
  %v1217 = vsel %vm1205, %v1192, %v839
  %v1219 = vsel %vm1205, %v1194, %v841
  %v1221 = vsel %vm1205, %v1196, %v843
  %v1223 = vsel %vm1205, %v1198, %v845
  %v1225 = vsel %vm1205, %v1200, %v847
  %v1227 = vsel %vm1205, %v1202, %v849
  %v1229 = vsel %vm1205, %v1204, %v851
  %vm1230 = vcmask 97280
  %v1232 = vsel %vm1230, %v1207, %v913
  %v1234 = vsel %vm1230, %v1209, %v915
  %v1236 = vsel %vm1230, %v1211, %v917
  %v1238 = vsel %vm1230, %v1213, %v919
  %v1240 = vsel %vm1230, %v1215, %v921
  %v1242 = vsel %vm1230, %v1217, %v923
  %v1244 = vsel %vm1230, %v1219, %v925
  %v1246 = vsel %vm1230, %v1221, %v927
  %v1248 = vsel %vm1230, %v1223, %v929
  %v1250 = vsel %vm1230, %v1225, %v931
  %v1252 = vsel %vm1230, %v1227, %v933
  %v1254 = vsel %vm1230, %v1229, %v935
  %vm1255 = vcmask 113664
  %v1257 = vsel %vm1255, %v1232, %v997
  %v1259 = vsel %vm1255, %v1234, %v999
  %v1261 = vsel %vm1255, %v1236, %v1001
  %v1263 = vsel %vm1255, %v1238, %v1003
  %v1265 = vsel %vm1255, %v1240, %v1005
  %v1267 = vsel %vm1255, %v1242, %v1007
  %v1269 = vsel %vm1255, %v1244, %v1009
  %v1271 = vsel %vm1255, %v1246, %v1011
  %v1273 = vsel %vm1255, %v1248, %v1013
  %v1275 = vsel %vm1255, %v1250, %v1015
  %v1277 = vsel %vm1255, %v1252, %v1017
  %v1279 = vsel %vm1255, %v1254, %v1019
  %vm1280 = vcmask 130048
  %v1282 = vsel %vm1280, %v1257, %v1081
  %v1285 = vsel %vm1280, %v1259, %v1083
  %v1288 = vsel %vm1280, %v1261, %v1085
  %v1291 = vsel %vm1280, %v1263, %v1087
  %v1294 = vsel %vm1280, %v1265, %v1089
  %v1297 = vsel %vm1280, %v1267, %v1091
  %v1300 = vsel %vm1280, %v1269, %v1093
  %v1303 = vsel %vm1280, %v1271, %v1095
  %v1306 = vsel %vm1280, %v1273, %v1097
  %v1309 = vsel %vm1280, %v1275, %v1099
  %v1312 = vsel %vm1280, %v1277, %v1101
  %v1315 = vsel %vm1280, %v1279, %v1103
  %v1341 = vunpack.c.l.b16 %v33
  %v1342 = vunpack.c.l.b16 %v34
  %v1343 = vunpack.c.l.b16 %v35
  %v1344 = vunpack.c.l.b16 %v36
  %v1345 = vunpack.c.l.b16 %v37
  %v1346 = vunpack.c.l.b16 %v38
  %v1347 = vunpack.c.l.b16 %v39
  %v1348 = vunpack.c.l.b16 %v40
  %v1349 = vunpack.c.l.b16 %v41
  %v1350 = vunpack.c.l.b16 %v42
  %v1351 = vunpack.c.l.b16 %v43
  %v1352 = vunpack.c.l.b16 %v44
  %v1353 = vunpack.c.l.b16 %v45
  %v1354 = vunpack.c.l.b16 %v46
  %v1355 = vunpack.c.l.b16 %v47
  %v1356 = vunpack.c.l.b16 %v48
  %v1357 = vunpack.c.l.b16 %v49
  %v1358 = vunpack.c.l.b16 %v50
  %v1359 = vunpack.c.l.b16 %v51
  %v1360 = vunpack.c.l.b16 %v52
  %v1361 = vunpack.c.l.b16 %v53
  %v1362 = vunpack.c.l.b16 %v54
  %v1363 = vunpack.c.l.b16 %v55
  %v1364 = vunpack.c.l.b16 %v56
  %v1365 = vpack.c.b16 %v1342, %v1341
  %v1366 = vpack.c.b16 %v1344, %v1343
  %v1367 = vpack.c.b16 %v1346, %v1345
  %v1368 = vpack.c.b16 %v1348, %v1347
  %v1369 = vpack.c.b16 %v1350, %v1349
  %v1370 = vpack.c.b16 %v1352, %v1351
  %v1371 = vpack.c.b16 %v1354, %v1353
  %v1372 = vpack.c.b16 %v1356, %v1355
  %v1373 = vpack.c.b16 %v1358, %v1357
  %v1374 = vpack.c.b16 %v1360, %v1359
  %v1375 = vpack.c.b16 %v1362, %v1361
  %v1376 = vpack.c.b16 %v1364, %v1363
  %v1401 = vunpack.c.l.b16 %v83
  %v1402 = vunpack.c.l.b16 %v84
  %v1403 = vunpack.c.l.b16 %v85
  %v1404 = vunpack.c.l.b16 %v86
  %v1405 = vunpack.c.l.b16 %v87
  %v1406 = vunpack.c.l.b16 %v88
  %v1407 = vunpack.c.l.b16 %v89
  %v1408 = vunpack.c.l.b16 %v90
  %v1409 = vunpack.c.l.b16 %v91
  %v1410 = vunpack.c.l.b16 %v92
  %v1411 = vunpack.c.l.b16 %v93
  %v1412 = vunpack.c.l.b16 %v94
  %v1413 = vunpack.c.l.b16 %v95
  %v1414 = vunpack.c.l.b16 %v96
  %v1415 = vunpack.c.l.b16 %v97
  %v1416 = vunpack.c.l.b16 %v98
  %v1417 = vunpack.c.l.b16 %v99
  %v1418 = vunpack.c.l.b16 %v100
  %v1419 = vunpack.c.l.b16 %v101
  %v1420 = vunpack.c.l.b16 %v102
  %v1421 = vunpack.c.l.b16 %v103
  %v1422 = vunpack.c.l.b16 %v104
  %v1423 = vunpack.c.l.b16 %v105
  %v1424 = vunpack.c.l.b16 %v106
  %v1425 = vpack.c.b16 %v1402, %v1401
  %v1426 = vpack.c.b16 %v1404, %v1403
  %v1427 = vpack.c.b16 %v1406, %v1405
  %v1428 = vpack.c.b16 %v1408, %v1407
  %v1429 = vpack.c.b16 %v1410, %v1409
  %v1430 = vpack.c.b16 %v1412, %v1411
  %v1431 = vpack.c.b16 %v1414, %v1413
  %v1432 = vpack.c.b16 %v1416, %v1415
  %v1433 = vpack.c.b16 %v1418, %v1417
  %v1434 = vpack.c.b16 %v1420, %v1419
  %v1435 = vpack.c.b16 %v1422, %v1421
  %v1436 = vpack.c.b16 %v1424, %v1423
  %1437 = vrot.lane.b32.xlu0 %v1425, 2
  %v1438 = vpop.permute.xlu0 %1437
  %1439 = vrot.lane.b32.xlu0 %v1426, 2
  %v1440 = vpop.permute.xlu0 %1439
  %1441 = vrot.lane.b32.xlu0 %v1427, 2
  %v1442 = vpop.permute.xlu0 %1441
  %1443 = vrot.lane.b32.xlu0 %v1428, 2
  %v1444 = vpop.permute.xlu0 %1443
  %1445 = vrot.lane.b32.xlu0 %v1429, 2
  %v1446 = vpop.permute.xlu0 %1445
  %1447 = vrot.lane.b32.xlu0 %v1430, 2
  %v1448 = vpop.permute.xlu0 %1447
  %1449 = vrot.lane.b32.xlu0 %v1431, 2
  %v1450 = vpop.permute.xlu0 %1449
  %1451 = vrot.lane.b32.xlu0 %v1432, 2
  %v1452 = vpop.permute.xlu0 %1451
  %1453 = vrot.lane.b32.xlu0 %v1433, 2
  %v1454 = vpop.permute.xlu0 %1453
  %1455 = vrot.lane.b32.xlu0 %v1434, 2
  %v1456 = vpop.permute.xlu0 %1455
  %1457 = vrot.lane.b32.xlu0 %v1435, 2
  %v1458 = vpop.permute.xlu0 %1457
  %1459 = vrot.lane.b32.xlu0 %v1436, 2
  %v1460 = vpop.permute.xlu0 %1459
  %v1485 = vunpack.c.l.b16 %v133
  %v1486 = vunpack.c.l.b16 %v134
  %v1487 = vunpack.c.l.b16 %v135
  %v1488 = vunpack.c.l.b16 %v136
  %v1489 = vunpack.c.l.b16 %v137
  %v1490 = vunpack.c.l.b16 %v138
  %v1491 = vunpack.c.l.b16 %v139
  %v1492 = vunpack.c.l.b16 %v140
  %v1493 = vunpack.c.l.b16 %v141
  %v1494 = vunpack.c.l.b16 %v142
  %v1495 = vunpack.c.l.b16 %v143
  %v1496 = vunpack.c.l.b16 %v144
  %v1497 = vunpack.c.l.b16 %v145
  %v1498 = vunpack.c.l.b16 %v146
  %v1499 = vunpack.c.l.b16 %v147
  %v1500 = vunpack.c.l.b16 %v148
  %v1501 = vunpack.c.l.b16 %v149
  %v1502 = vunpack.c.l.b16 %v150
  %v1503 = vunpack.c.l.b16 %v151
  %v1504 = vunpack.c.l.b16 %v152
  %v1505 = vunpack.c.l.b16 %v153
  %v1506 = vunpack.c.l.b16 %v154
  %v1507 = vunpack.c.l.b16 %v155
  %v1508 = vunpack.c.l.b16 %v156
  %v1509 = vpack.c.b16 %v1486, %v1485
  %v1510 = vpack.c.b16 %v1488, %v1487
  %v1511 = vpack.c.b16 %v1490, %v1489
  %v1512 = vpack.c.b16 %v1492, %v1491
  %v1513 = vpack.c.b16 %v1494, %v1493
  %v1514 = vpack.c.b16 %v1496, %v1495
  %v1515 = vpack.c.b16 %v1498, %v1497
  %v1516 = vpack.c.b16 %v1500, %v1499
  %v1517 = vpack.c.b16 %v1502, %v1501
  %v1518 = vpack.c.b16 %v1504, %v1503
  %v1519 = vpack.c.b16 %v1506, %v1505
  %v1520 = vpack.c.b16 %v1508, %v1507
  %1521 = vrot.lane.b32.xlu0 %v1509, 4
  %v1522 = vpop.permute.xlu0 %1521
  %1523 = vrot.lane.b32.xlu0 %v1510, 4
  %v1524 = vpop.permute.xlu0 %1523
  %1525 = vrot.lane.b32.xlu0 %v1511, 4
  %v1526 = vpop.permute.xlu0 %1525
  %1527 = vrot.lane.b32.xlu0 %v1512, 4
  %v1528 = vpop.permute.xlu0 %1527
  %1529 = vrot.lane.b32.xlu0 %v1513, 4
  %v1530 = vpop.permute.xlu0 %1529
  %1531 = vrot.lane.b32.xlu0 %v1514, 4
  %v1532 = vpop.permute.xlu0 %1531
  %1533 = vrot.lane.b32.xlu0 %v1515, 4
  %v1534 = vpop.permute.xlu0 %1533
  %1535 = vrot.lane.b32.xlu0 %v1516, 4
  %v1536 = vpop.permute.xlu0 %1535
  %1537 = vrot.lane.b32.xlu0 %v1517, 4
  %v1538 = vpop.permute.xlu0 %1537
  %1539 = vrot.lane.b32.xlu0 %v1518, 4
  %v1540 = vpop.permute.xlu0 %1539
  %1541 = vrot.lane.b32.xlu0 %v1519, 4
  %v1542 = vpop.permute.xlu0 %1541
  %1543 = vrot.lane.b32.xlu0 %v1520, 4
  %v1544 = vpop.permute.xlu0 %1543
  %v1569 = vunpack.c.l.b16 %v183
  %v1570 = vunpack.c.l.b16 %v184
  %v1571 = vunpack.c.l.b16 %v185
  %v1572 = vunpack.c.l.b16 %v186
  %v1573 = vunpack.c.l.b16 %v187
  %v1574 = vunpack.c.l.b16 %v188
  %v1575 = vunpack.c.l.b16 %v189
  %v1576 = vunpack.c.l.b16 %v190
  %v1577 = vunpack.c.l.b16 %v191
  %v1578 = vunpack.c.l.b16 %v192
  %v1579 = vunpack.c.l.b16 %v193
  %v1580 = vunpack.c.l.b16 %v194
  %v1581 = vunpack.c.l.b16 %v195
  %v1582 = vunpack.c.l.b16 %v196
  %v1583 = vunpack.c.l.b16 %v197
  %v1584 = vunpack.c.l.b16 %v198
  %v1585 = vunpack.c.l.b16 %v199
  %v1586 = vunpack.c.l.b16 %v200
  %v1587 = vunpack.c.l.b16 %v201
  %v1588 = vunpack.c.l.b16 %v202
  %v1589 = vunpack.c.l.b16 %v203
  %v1590 = vunpack.c.l.b16 %v204
  %v1591 = vunpack.c.l.b16 %v205
  %v1592 = vunpack.c.l.b16 %v206
  %v1593 = vpack.c.b16 %v1570, %v1569
  %v1594 = vpack.c.b16 %v1572, %v1571
  %v1595 = vpack.c.b16 %v1574, %v1573
  %v1596 = vpack.c.b16 %v1576, %v1575
  %v1597 = vpack.c.b16 %v1578, %v1577
  %v1598 = vpack.c.b16 %v1580, %v1579
  %v1599 = vpack.c.b16 %v1582, %v1581
  %v1600 = vpack.c.b16 %v1584, %v1583
  %v1601 = vpack.c.b16 %v1586, %v1585
  %v1602 = vpack.c.b16 %v1588, %v1587
  %v1603 = vpack.c.b16 %v1590, %v1589
  %v1604 = vpack.c.b16 %v1592, %v1591
  %1605 = vrot.lane.b32.xlu0 %v1593, 6
  %v1606 = vpop.permute.xlu0 %1605
  %1607 = vrot.lane.b32.xlu0 %v1594, 6
  %v1608 = vpop.permute.xlu0 %1607
  %1609 = vrot.lane.b32.xlu0 %v1595, 6
  %v1610 = vpop.permute.xlu0 %1609
  %1611 = vrot.lane.b32.xlu0 %v1596, 6
  %v1612 = vpop.permute.xlu0 %1611
  %1613 = vrot.lane.b32.xlu0 %v1597, 6
  %v1614 = vpop.permute.xlu0 %1613
  %1615 = vrot.lane.b32.xlu0 %v1598, 6
  %v1616 = vpop.permute.xlu0 %1615
  %1617 = vrot.lane.b32.xlu0 %v1599, 6
  %v1618 = vpop.permute.xlu0 %1617
  %1619 = vrot.lane.b32.xlu0 %v1600, 6
  %v1620 = vpop.permute.xlu0 %1619
  %1621 = vrot.lane.b32.xlu0 %v1601, 6
  %v1622 = vpop.permute.xlu0 %1621
  %1623 = vrot.lane.b32.xlu0 %v1602, 6
  %v1624 = vpop.permute.xlu0 %1623
  %1625 = vrot.lane.b32.xlu0 %v1603, 6
  %v1626 = vpop.permute.xlu0 %1625
  %1627 = vrot.lane.b32.xlu0 %v1604, 6
  %v1628 = vpop.permute.xlu0 %1627
  %v1653 = vunpack.c.l.b16 %v233
  %v1654 = vunpack.c.l.b16 %v234
  %v1655 = vunpack.c.l.b16 %v235
  %v1656 = vunpack.c.l.b16 %v236
  %v1657 = vunpack.c.l.b16 %v237
  %v1658 = vunpack.c.l.b16 %v238
  %v1659 = vunpack.c.l.b16 %v239
  %v1660 = vunpack.c.l.b16 %v240
  %v1661 = vunpack.c.l.b16 %v241
  %v1662 = vunpack.c.l.b16 %v242
  %v1663 = vunpack.c.l.b16 %v243
  %v1664 = vunpack.c.l.b16 %v244
  %v1665 = vunpack.c.l.b16 %v245
  %v1666 = vunpack.c.l.b16 %v246
  %v1667 = vunpack.c.l.b16 %v247
  %v1668 = vunpack.c.l.b16 %v248
  %v1669 = vunpack.c.l.b16 %v249
  %v1670 = vunpack.c.l.b16 %v250
  %v1671 = vunpack.c.l.b16 %v251
  %v1672 = vunpack.c.l.b16 %v252
  %v1673 = vunpack.c.l.b16 %v253
  %v1674 = vunpack.c.l.b16 %v254
  %v1675 = vunpack.c.l.b16 %v255
  %v1676 = vunpack.c.l.b16 %v256
  %v1677 = vpack.c.b16 %v1654, %v1653
  %v1678 = vpack.c.b16 %v1656, %v1655
  %v1679 = vpack.c.b16 %v1658, %v1657
  %v1680 = vpack.c.b16 %v1660, %v1659
  %v1681 = vpack.c.b16 %v1662, %v1661
  %v1682 = vpack.c.b16 %v1664, %v1663
  %v1683 = vpack.c.b16 %v1666, %v1665
  %v1684 = vpack.c.b16 %v1668, %v1667
  %v1685 = vpack.c.b16 %v1670, %v1669
  %v1686 = vpack.c.b16 %v1672, %v1671
  %v1687 = vpack.c.b16 %v1674, %v1673
  %v1688 = vpack.c.b16 %v1676, %v1675
  %1689 = vrot.lane.b32.xlu0 %v1677, 8
  %v1690 = vpop.permute.xlu0 %1689
  %1691 = vrot.lane.b32.xlu0 %v1678, 8
  %v1692 = vpop.permute.xlu0 %1691
  %1693 = vrot.lane.b32.xlu0 %v1679, 8
  %v1694 = vpop.permute.xlu0 %1693
  %1695 = vrot.lane.b32.xlu0 %v1680, 8
  %v1696 = vpop.permute.xlu0 %1695
  %1697 = vrot.lane.b32.xlu0 %v1681, 8
  %v1698 = vpop.permute.xlu0 %1697
  %1699 = vrot.lane.b32.xlu0 %v1682, 8
  %v1700 = vpop.permute.xlu0 %1699
  %1701 = vrot.lane.b32.xlu0 %v1683, 8
  %v1702 = vpop.permute.xlu0 %1701
  %1703 = vrot.lane.b32.xlu0 %v1684, 8
  %v1704 = vpop.permute.xlu0 %1703
  %1705 = vrot.lane.b32.xlu0 %v1685, 8
  %v1706 = vpop.permute.xlu0 %1705
  %1707 = vrot.lane.b32.xlu0 %v1686, 8
  %v1708 = vpop.permute.xlu0 %1707
  %1709 = vrot.lane.b32.xlu0 %v1687, 8
  %v1710 = vpop.permute.xlu0 %1709
  %1711 = vrot.lane.b32.xlu0 %v1688, 8
  %v1712 = vpop.permute.xlu0 %1711
  %v1737 = vunpack.c.l.b16 %v283
  %v1738 = vunpack.c.l.b16 %v284
  %v1739 = vunpack.c.l.b16 %v285
  %v1740 = vunpack.c.l.b16 %v286
  %v1741 = vunpack.c.l.b16 %v287
  %v1742 = vunpack.c.l.b16 %v288
  %v1743 = vunpack.c.l.b16 %v289
  %v1744 = vunpack.c.l.b16 %v290
  %v1745 = vunpack.c.l.b16 %v291
  %v1746 = vunpack.c.l.b16 %v292
  %v1747 = vunpack.c.l.b16 %v293
  %v1748 = vunpack.c.l.b16 %v294
  %v1749 = vunpack.c.l.b16 %v295
  %v1750 = vunpack.c.l.b16 %v296
  %v1751 = vunpack.c.l.b16 %v297
  %v1752 = vunpack.c.l.b16 %v298
  %v1753 = vunpack.c.l.b16 %v299
  %v1754 = vunpack.c.l.b16 %v300
  %v1755 = vunpack.c.l.b16 %v301
  %v1756 = vunpack.c.l.b16 %v302
  %v1757 = vunpack.c.l.b16 %v303
  %v1758 = vunpack.c.l.b16 %v304
  %v1759 = vunpack.c.l.b16 %v305
  %v1760 = vunpack.c.l.b16 %v306
  %v1761 = vpack.c.b16 %v1738, %v1737
  %v1762 = vpack.c.b16 %v1740, %v1739
  %v1763 = vpack.c.b16 %v1742, %v1741
  %v1764 = vpack.c.b16 %v1744, %v1743
  %v1765 = vpack.c.b16 %v1746, %v1745
  %v1766 = vpack.c.b16 %v1748, %v1747
  %v1767 = vpack.c.b16 %v1750, %v1749
  %v1768 = vpack.c.b16 %v1752, %v1751
  %v1769 = vpack.c.b16 %v1754, %v1753
  %v1770 = vpack.c.b16 %v1756, %v1755
  %v1771 = vpack.c.b16 %v1758, %v1757
  %v1772 = vpack.c.b16 %v1760, %v1759
  %1773 = vrot.lane.b32.xlu0 %v1761, 10
  %v1774 = vpop.permute.xlu0 %1773
  %1775 = vrot.lane.b32.xlu0 %v1762, 10
  %v1776 = vpop.permute.xlu0 %1775
  %1777 = vrot.lane.b32.xlu0 %v1763, 10
  %v1778 = vpop.permute.xlu0 %1777
  %1779 = vrot.lane.b32.xlu0 %v1764, 10
  %v1780 = vpop.permute.xlu0 %1779
  %1781 = vrot.lane.b32.xlu0 %v1765, 10
  %v1782 = vpop.permute.xlu0 %1781
  %1783 = vrot.lane.b32.xlu0 %v1766, 10
  %v1784 = vpop.permute.xlu0 %1783
  %1785 = vrot.lane.b32.xlu0 %v1767, 10
  %v1786 = vpop.permute.xlu0 %1785
  %1787 = vrot.lane.b32.xlu0 %v1768, 10
  %v1788 = vpop.permute.xlu0 %1787
  %1789 = vrot.lane.b32.xlu0 %v1769, 10
  %v1790 = vpop.permute.xlu0 %1789
  %1791 = vrot.lane.b32.xlu0 %v1770, 10
  %v1792 = vpop.permute.xlu0 %1791
  %1793 = vrot.lane.b32.xlu0 %v1771, 10
  %v1794 = vpop.permute.xlu0 %1793
  %1795 = vrot.lane.b32.xlu0 %v1772, 10
  %v1796 = vpop.permute.xlu0 %1795
  %v1821 = vunpack.c.l.b16 %v333
  %v1822 = vunpack.c.l.b16 %v334
  %v1823 = vunpack.c.l.b16 %v335
  %v1824 = vunpack.c.l.b16 %v336
  %v1825 = vunpack.c.l.b16 %v337
  %v1826 = vunpack.c.l.b16 %v338
  %v1827 = vunpack.c.l.b16 %v339
  %v1828 = vunpack.c.l.b16 %v340
  %v1829 = vunpack.c.l.b16 %v341
  %v1830 = vunpack.c.l.b16 %v342
  %v1831 = vunpack.c.l.b16 %v343
  %v1832 = vunpack.c.l.b16 %v344
  %v1833 = vunpack.c.l.b16 %v345
  %v1834 = vunpack.c.l.b16 %v346
  %v1835 = vunpack.c.l.b16 %v347
  %v1836 = vunpack.c.l.b16 %v348
  %v1837 = vunpack.c.l.b16 %v349
  %v1838 = vunpack.c.l.b16 %v350
  %v1839 = vunpack.c.l.b16 %v351
  %v1840 = vunpack.c.l.b16 %v352
  %v1841 = vunpack.c.l.b16 %v353
  %v1842 = vunpack.c.l.b16 %v354
  %v1843 = vunpack.c.l.b16 %v355
  %v1844 = vunpack.c.l.b16 %v356
  %v1845 = vpack.c.b16 %v1822, %v1821
  %v1846 = vpack.c.b16 %v1824, %v1823
  %v1847 = vpack.c.b16 %v1826, %v1825
  %v1848 = vpack.c.b16 %v1828, %v1827
  %v1849 = vpack.c.b16 %v1830, %v1829
  %v1850 = vpack.c.b16 %v1832, %v1831
  %v1851 = vpack.c.b16 %v1834, %v1833
  %v1852 = vpack.c.b16 %v1836, %v1835
  %v1853 = vpack.c.b16 %v1838, %v1837
  %v1854 = vpack.c.b16 %v1840, %v1839
  %v1855 = vpack.c.b16 %v1842, %v1841
  %v1856 = vpack.c.b16 %v1844, %v1843
  %1857 = vrot.lane.b32.xlu0 %v1845, 12
  %v1858 = vpop.permute.xlu0 %1857
  %1859 = vrot.lane.b32.xlu0 %v1846, 12
  %v1860 = vpop.permute.xlu0 %1859
  %1861 = vrot.lane.b32.xlu0 %v1847, 12
  %v1862 = vpop.permute.xlu0 %1861
  %1863 = vrot.lane.b32.xlu0 %v1848, 12
  %v1864 = vpop.permute.xlu0 %1863
  %1865 = vrot.lane.b32.xlu0 %v1849, 12
  %v1866 = vpop.permute.xlu0 %1865
  %1867 = vrot.lane.b32.xlu0 %v1850, 12
  %v1868 = vpop.permute.xlu0 %1867
  %1869 = vrot.lane.b32.xlu0 %v1851, 12
  %v1870 = vpop.permute.xlu0 %1869
  %1871 = vrot.lane.b32.xlu0 %v1852, 12
  %v1872 = vpop.permute.xlu0 %1871
  %1873 = vrot.lane.b32.xlu0 %v1853, 12
  %v1874 = vpop.permute.xlu0 %1873
  %1875 = vrot.lane.b32.xlu0 %v1854, 12
  %v1876 = vpop.permute.xlu0 %1875
  %1877 = vrot.lane.b32.xlu0 %v1855, 12
  %v1878 = vpop.permute.xlu0 %1877
  %1879 = vrot.lane.b32.xlu0 %v1856, 12
  %v1880 = vpop.permute.xlu0 %1879
  %v1905 = vunpack.c.l.b16 %v383
  %v1906 = vunpack.c.l.b16 %v384
  %v1907 = vunpack.c.l.b16 %v385
  %v1908 = vunpack.c.l.b16 %v386
  %v1909 = vunpack.c.l.b16 %v387
  %v1910 = vunpack.c.l.b16 %v388
  %v1911 = vunpack.c.l.b16 %v389
  %v1912 = vunpack.c.l.b16 %v390
  %v1913 = vunpack.c.l.b16 %v391
  %v1914 = vunpack.c.l.b16 %v392
  %v1915 = vunpack.c.l.b16 %v393
  %v1916 = vunpack.c.l.b16 %v394
  %v1917 = vunpack.c.l.b16 %v395
  %v1918 = vunpack.c.l.b16 %v396
  %v1919 = vunpack.c.l.b16 %v397
  %v1920 = vunpack.c.l.b16 %v398
  %v1921 = vunpack.c.l.b16 %v399
  %v1922 = vunpack.c.l.b16 %v400
  %v1923 = vunpack.c.l.b16 %v401
  %v1924 = vunpack.c.l.b16 %v402
  %v1925 = vunpack.c.l.b16 %v403
  %v1926 = vunpack.c.l.b16 %v404
  %v1927 = vunpack.c.l.b16 %v405
  %v1928 = vunpack.c.l.b16 %v406
  %v1929 = vpack.c.b16 %v1906, %v1905
  %v1930 = vpack.c.b16 %v1908, %v1907
  %v1931 = vpack.c.b16 %v1910, %v1909
  %v1932 = vpack.c.b16 %v1912, %v1911
  %v1933 = vpack.c.b16 %v1914, %v1913
  %v1934 = vpack.c.b16 %v1916, %v1915
  %v1935 = vpack.c.b16 %v1918, %v1917
  %v1936 = vpack.c.b16 %v1920, %v1919
  %v1937 = vpack.c.b16 %v1922, %v1921
  %v1938 = vpack.c.b16 %v1924, %v1923
  %v1939 = vpack.c.b16 %v1926, %v1925
  %v1940 = vpack.c.b16 %v1928, %v1927
  %1941 = vrot.lane.b32.xlu0 %v1929, 14
  %v1942 = vpop.permute.xlu0 %1941
  %1943 = vrot.lane.b32.xlu0 %v1930, 14
  %v1944 = vpop.permute.xlu0 %1943
  %1945 = vrot.lane.b32.xlu0 %v1931, 14
  %v1946 = vpop.permute.xlu0 %1945
  %1947 = vrot.lane.b32.xlu0 %v1932, 14
  %v1948 = vpop.permute.xlu0 %1947
  %1949 = vrot.lane.b32.xlu0 %v1933, 14
  %v1950 = vpop.permute.xlu0 %1949
  %1951 = vrot.lane.b32.xlu0 %v1934, 14
  %v1952 = vpop.permute.xlu0 %1951
  %1953 = vrot.lane.b32.xlu0 %v1935, 14
  %v1954 = vpop.permute.xlu0 %1953
  %1955 = vrot.lane.b32.xlu0 %v1936, 14
  %v1956 = vpop.permute.xlu0 %1955
  %1957 = vrot.lane.b32.xlu0 %v1937, 14
  %v1958 = vpop.permute.xlu0 %1957
  %1959 = vrot.lane.b32.xlu0 %v1938, 14
  %v1960 = vpop.permute.xlu0 %1959
  %1961 = vrot.lane.b32.xlu0 %v1939, 14
  %v1962 = vpop.permute.xlu0 %1961
  %1963 = vrot.lane.b32.xlu0 %v1940, 14
  %v1964 = vpop.permute.xlu0 %1963
  %v1967 = vsel %vm1104, %v1365, %v1438
  %v1970 = vsel %vm1104, %v1366, %v1440
  %v1973 = vsel %vm1104, %v1367, %v1442
  %v1976 = vsel %vm1104, %v1368, %v1444
  %v1979 = vsel %vm1104, %v1369, %v1446
  %v1982 = vsel %vm1104, %v1370, %v1448
  %v1985 = vsel %vm1104, %v1371, %v1450
  %v1988 = vsel %vm1104, %v1372, %v1452
  %v1991 = vsel %vm1104, %v1373, %v1454
  %v1994 = vsel %vm1104, %v1374, %v1456
  %v1997 = vsel %vm1104, %v1375, %v1458
  %v2000 = vsel %vm1104, %v1376, %v1460
  %v2002 = vsel %vm1130, %v1967, %v1522
  %v2004 = vsel %vm1130, %v1970, %v1524
  %v2006 = vsel %vm1130, %v1973, %v1526
  %v2008 = vsel %vm1130, %v1976, %v1528
  %v2010 = vsel %vm1130, %v1979, %v1530
  %v2012 = vsel %vm1130, %v1982, %v1532
  %v2014 = vsel %vm1130, %v1985, %v1534
  %v2016 = vsel %vm1130, %v1988, %v1536
  %v2018 = vsel %vm1130, %v1991, %v1538
  %v2020 = vsel %vm1130, %v1994, %v1540
  %v2022 = vsel %vm1130, %v1997, %v1542
  %v2024 = vsel %vm1130, %v2000, %v1544
  %v2026 = vsel %vm1155, %v2002, %v1606
  %v2028 = vsel %vm1155, %v2004, %v1608
  %v2030 = vsel %vm1155, %v2006, %v1610
  %v2032 = vsel %vm1155, %v2008, %v1612
  %v2034 = vsel %vm1155, %v2010, %v1614
  %v2036 = vsel %vm1155, %v2012, %v1616
  %v2038 = vsel %vm1155, %v2014, %v1618
  %v2040 = vsel %vm1155, %v2016, %v1620
  %v2042 = vsel %vm1155, %v2018, %v1622
  %v2044 = vsel %vm1155, %v2020, %v1624
  %v2046 = vsel %vm1155, %v2022, %v1626
  %v2048 = vsel %vm1155, %v2024, %v1628
  %v2050 = vsel %vm1180, %v2026, %v1690
  %v2052 = vsel %vm1180, %v2028, %v1692
  %v2054 = vsel %vm1180, %v2030, %v1694
  %v2056 = vsel %vm1180, %v2032, %v1696
  %v2058 = vsel %vm1180, %v2034, %v1698
  %v2060 = vsel %vm1180, %v2036, %v1700
  %v2062 = vsel %vm1180, %v2038, %v1702
  %v2064 = vsel %vm1180, %v2040, %v1704
  %v2066 = vsel %vm1180, %v2042, %v1706
  %v2068 = vsel %vm1180, %v2044, %v1708
  %v2070 = vsel %vm1180, %v2046, %v1710
  %v2072 = vsel %vm1180, %v2048, %v1712
  %v2074 = vsel %vm1205, %v2050, %v1774
  %v2076 = vsel %vm1205, %v2052, %v1776
  %v2078 = vsel %vm1205, %v2054, %v1778
  %v2080 = vsel %vm1205, %v2056, %v1780
  %v2082 = vsel %vm1205, %v2058, %v1782
  %v2084 = vsel %vm1205, %v2060, %v1784
  %v2086 = vsel %vm1205, %v2062, %v1786
  %v2088 = vsel %vm1205, %v2064, %v1788
  %v2090 = vsel %vm1205, %v2066, %v1790
  %v2092 = vsel %vm1205, %v2068, %v1792
  %v2094 = vsel %vm1205, %v2070, %v1794
  %v2096 = vsel %vm1205, %v2072, %v1796
  %v2098 = vsel %vm1230, %v2074, %v1858
  %v2100 = vsel %vm1230, %v2076, %v1860
  %v2102 = vsel %vm1230, %v2078, %v1862
  %v2104 = vsel %vm1230, %v2080, %v1864
  %v2106 = vsel %vm1230, %v2082, %v1866
  %v2108 = vsel %vm1230, %v2084, %v1868
  %v2110 = vsel %vm1230, %v2086, %v1870
  %v2112 = vsel %vm1230, %v2088, %v1872
  %v2114 = vsel %vm1230, %v2090, %v1874
  %v2116 = vsel %vm1230, %v2092, %v1876
  %v2118 = vsel %vm1230, %v2094, %v1878
  %v2120 = vsel %vm1230, %v2096, %v1880
  %v2122 = vsel %vm1255, %v2098, %v1942
  %v2124 = vsel %vm1255, %v2100, %v1944
  %v2126 = vsel %vm1255, %v2102, %v1946
  %v2128 = vsel %vm1255, %v2104, %v1948
  %v2130 = vsel %vm1255, %v2106, %v1950
  %v2132 = vsel %vm1255, %v2108, %v1952
  %v2134 = vsel %vm1255, %v2110, %v1954
  %v2136 = vsel %vm1255, %v2112, %v1956
  %v2138 = vsel %vm1255, %v2114, %v1958
  %v2140 = vsel %vm1255, %v2116, %v1960
  %v2142 = vsel %vm1255, %v2118, %v1962
  %v2144 = vsel %vm1255, %v2120, %v1964
  %v2145 = vsel %vm1280, %v2122, 0
  %v2147 = vsel %vm1280, %v2124, 0
  %v2149 = vsel %vm1280, %v2126, 0
  %v2151 = vsel %vm1280, %v2128, 0
  %v2153 = vsel %vm1280, %v2130, 0
  %v2155 = vsel %vm1280, %v2132, 0
  %v2157 = vsel %vm1280, %v2134, 0
  %v2159 = vsel %vm1280, %v2136, 0
  %v2161 = vsel %vm1280, %v2138, 0
  %v2163 = vsel %vm1280, %v2140, 0
  %v2165 = vsel %vm1280, %v2142, 0
  %v2167 = vsel %vm1280, %v2144, 0
  %v2169 = vld [vmem:[%s1] sm:$0xff]
  %v2170 = vld [vmem:[%s1 + $0x8] sm:$0xf]
  %v2171 = vld [vmem:[%s1 + $0xc] sm:$0xff]
  %v2172 = vld [vmem:[%s1 + $0x14] sm:$0xf]
  %v2173 = vld [vmem:[%s1 + $0x18] sm:$0xff]
  %v2174 = vld [vmem:[%s1 + $0x20] sm:$0xf]
  %v2175 = vld [vmem:[%s1 + $0x24] sm:$0xff]
  %v2176 = vld [vmem:[%s1 + $0x2c] sm:$0xf]
  %v2177 = vld [vmem:[%s1 + $0x30] sm:$0xff]
  %v2178 = vld [vmem:[%s1 + $0x38] sm:$0xf]
  %v2179 = vld [vmem:[%s1 + $0x3c] sm:$0xff]
  %v2180 = vld [vmem:[%s1 + $0x44] sm:$0xf]
  %v2181 = vld [vmem:[%s1 + $0x48] sm:$0xff]
  %v2182 = vld [vmem:[%s1 + $0x50] sm:$0xf]
  %v2183 = vld [vmem:[%s1 + $0x54] sm:$0xff]
  %v2184 = vld [vmem:[%s1 + $0x5c] sm:$0xf]
  %v2185 = vld [vmem:[%s1 + $0x60] sm:$0xff]
  %v2186 = vld [vmem:[%s1 + $0x68] sm:$0xf]
  %v2187 = vld [vmem:[%s1 + $0x6c] sm:$0xff]
  %v2188 = vld [vmem:[%s1 + $0x74] sm:$0xf]
  %v2189 = vld [vmem:[%s1 + $0x78] sm:$0xff]
  %v2190 = vld [vmem:[%s1 + $0x80] sm:$0xf]
  %v2191 = vld [vmem:[%s1 + $0x84] sm:$0xff]
  %v2192 = vld [vmem:[%s1 + $0x8c] sm:$0xf]
  %v2193 = vld [vmem:[%s1 + $0x90] sm:$0xff]
  %v2194 = vld [vmem:[%s1 + $0x98] sm:$0xf]
  %v2195 = vld [vmem:[%s1 + $0x9c] sm:$0xff]
  %v2196 = vld [vmem:[%s1 + $0xa4] sm:$0xf]
  %v2197 = vld [vmem:[%s1 + $0xa8] sm:$0xff]
  %v2198 = vld [vmem:[%s1 + $0xb0] sm:$0xf]
  %v2199 = vld [vmem:[%s1 + $0xb4] sm:$0xff]
  %v2200 = vld [vmem:[%s1 + $0xbc] sm:$0xf]
  %v2201 = vld [vmem:[%s1 + $0xc0] sm:$0xff]
  %v2202 = vld [vmem:[%s1 + $0xc8] sm:$0xf]
  %v2203 = vld [vmem:[%s1 + $0xcc] sm:$0xff]
  %v2204 = vld [vmem:[%s1 + $0xd4] sm:$0xf]
  %v2205 = vld [vmem:[%s2] sm:$0xff]
  %v2206 = vld [vmem:[%s2 + $0x8] sm:$0xff]
  %v2207 = vld [vmem:[%s2 + $0x10] sm:$0xff]
  %v2208 = vld [vmem:[%s2 + $0x18] sm:$0xff]
  %v2209 = vld [vmem:[%s2 + $0x20] sm:$0xff]
  %v2210 = vld [vmem:[%s2 + $0x28] sm:$0xff]
  %v2211 = vld [vmem:[%s2 + $0x30] sm:$0xff]
  %v2212 = vld [vmem:[%s2 + $0x38] sm:$0xff]
  %v2213 = vld [vmem:[%s2 + $0x40] sm:$0xff]
  %v2214 = vld [vmem:[%s2 + $0x48] sm:$0xff]
  %v2215 = vld [vmem:[%s2 + $0x50] sm:$0xff]
  %v2216 = vld [vmem:[%s2 + $0x58] sm:$0xff]
  %v2217 = vld [vmem:[%s2 + $0x60] sm:$0xff]
  %v2218 = vld [vmem:[%s2 + $0x68] sm:$0xff]
  %v2219 = vld [vmem:[%s2 + $0x70] sm:$0xff]
  %v2220 = vld [vmem:[%s2 + $0x78] sm:$0xff]
  %v2221 = vld [vmem:[%s2 + $0x80] sm:$0xff]
  %v2222 = vld [vmem:[%s2 + $0x88] sm:$0xff]
  %2224 = vset.pattern.permute.xlu0 0
  %2225 = vperm.xlu0 %2224, %v2205
  %v2226 = vpop.permute.xlu0 %2225
  %2229 = vset.pattern.permute.xlu0 0
  %2230 = vperm.xlu0 %2229, %v2206
  %v2231 = vpop.permute.xlu0 %2230
  %2234 = vset.pattern.permute.xlu0 0
  %2235 = vperm.xlu0 %2234, %v2207
  %v2236 = vpop.permute.xlu0 %2235
  %2239 = vset.pattern.permute.xlu0 0
  %2240 = vperm.xlu0 %2239, %v2208
  %v2241 = vpop.permute.xlu0 %2240
  %2244 = vset.pattern.permute.xlu0 0
  %2245 = vperm.xlu0 %2244, %v2209
  %v2246 = vpop.permute.xlu0 %2245
  %2249 = vset.pattern.permute.xlu0 0
  %2250 = vperm.xlu0 %2249, %v2210
  %v2251 = vpop.permute.xlu0 %2250
  %2254 = vset.pattern.permute.xlu0 0
  %2255 = vperm.xlu0 %2254, %v2211
  %v2256 = vpop.permute.xlu0 %2255
  %2259 = vset.pattern.permute.xlu0 0
  %2260 = vperm.xlu0 %2259, %v2212
  %v2261 = vpop.permute.xlu0 %2260
  %2264 = vset.pattern.permute.xlu0 0
  %2265 = vperm.xlu0 %2264, %v2213
  %v2266 = vpop.permute.xlu0 %2265
  %2269 = vset.pattern.permute.xlu0 0
  %2270 = vperm.xlu0 %2269, %v2214
  %v2271 = vpop.permute.xlu0 %2270
  %2274 = vset.pattern.permute.xlu0 0
  %2275 = vperm.xlu0 %2274, %v2215
  %v2276 = vpop.permute.xlu0 %2275
  %2279 = vset.pattern.permute.xlu0 0
  %2280 = vperm.xlu0 %2279, %v2216
  %v2281 = vpop.permute.xlu0 %2280
  %2284 = vset.pattern.permute.xlu0 0
  %2285 = vperm.xlu0 %2284, %v2217
  %v2286 = vpop.permute.xlu0 %2285
  %2289 = vset.pattern.permute.xlu0 0
  %2290 = vperm.xlu0 %2289, %v2218
  %v2291 = vpop.permute.xlu0 %2290
  %2294 = vset.pattern.permute.xlu0 0
  %2295 = vperm.xlu0 %2294, %v2219
  %v2296 = vpop.permute.xlu0 %2295
  %2299 = vset.pattern.permute.xlu0 0
  %2300 = vperm.xlu0 %2299, %v2220
  %v2301 = vpop.permute.xlu0 %2300
  %2304 = vset.pattern.permute.xlu0 0
  %2305 = vperm.xlu0 %2304, %v2221
  %v2306 = vpop.permute.xlu0 %2305
  %2309 = vset.pattern.permute.xlu0 0
  %2310 = vperm.xlu0 %2309, %v2222
  %v2311 = vpop.permute.xlu0 %2310
  %v2349 = vunpack.c.l.b16 %v2169
  %v2350 = vunpack.c.h.b16 %v2169
  %v2351 = vunpack.c.l.b16 %v2170
  %v2352 = vunpack.c.l.b16 %v2171
  %v2353 = vunpack.c.h.b16 %v2171
  %v2354 = vunpack.c.l.b16 %v2172
  %v2355 = vunpack.c.l.b16 %v2173
  %v2356 = vunpack.c.h.b16 %v2173
  %v2357 = vunpack.c.l.b16 %v2174
  %v2358 = vunpack.c.l.b16 %v2175
  %v2359 = vunpack.c.h.b16 %v2175
  %v2360 = vunpack.c.l.b16 %v2176
  %v2361 = vunpack.c.l.b16 %v2177
  %v2362 = vunpack.c.h.b16 %v2177
  %v2363 = vunpack.c.l.b16 %v2178
  %v2364 = vunpack.c.l.b16 %v2179
  %v2365 = vunpack.c.h.b16 %v2179
  %v2366 = vunpack.c.l.b16 %v2180
  %v2367 = vunpack.c.l.b16 %v2181
  %v2368 = vunpack.c.h.b16 %v2181
  %v2369 = vunpack.c.l.b16 %v2182
  %v2370 = vunpack.c.l.b16 %v2183
  %v2371 = vunpack.c.h.b16 %v2183
  %v2372 = vunpack.c.l.b16 %v2184
  %v2373 = vunpack.c.l.b16 %v2185
  %v2374 = vunpack.c.h.b16 %v2185
  %v2375 = vunpack.c.l.b16 %v2186
  %v2376 = vunpack.c.l.b16 %v2187
  %v2377 = vunpack.c.h.b16 %v2187
  %v2378 = vunpack.c.l.b16 %v2188
  %v2379 = vunpack.c.l.b16 %v2189
  %v2380 = vunpack.c.h.b16 %v2189
  %v2381 = vunpack.c.l.b16 %v2190
  %v2382 = vunpack.c.l.b16 %v2191
  %v2383 = vunpack.c.h.b16 %v2191
  %v2384 = vunpack.c.l.b16 %v2192
  %v2385 = vunpack.c.l.b16 %v2193
  %v2386 = vunpack.c.h.b16 %v2193
  %v2387 = vunpack.c.l.b16 %v2194
  %v2388 = vunpack.c.l.b16 %v2195
  %v2389 = vunpack.c.h.b16 %v2195
  %v2390 = vunpack.c.l.b16 %v2196
  %v2391 = vunpack.c.l.b16 %v2197
  %v2392 = vunpack.c.h.b16 %v2197
  %v2393 = vunpack.c.l.b16 %v2198
  %v2394 = vunpack.c.l.b16 %v2199
  %v2395 = vunpack.c.h.b16 %v2199
  %v2396 = vunpack.c.l.b16 %v2200
  %v2397 = vunpack.c.l.b16 %v2201
  %v2398 = vunpack.c.h.b16 %v2201
  %v2399 = vunpack.c.l.b16 %v2202
  %v2400 = vunpack.c.l.b16 %v2203
  %v2401 = vunpack.c.h.b16 %v2203
  %v2402 = vunpack.c.l.b16 %v2204
  %v2403 = vpack.c.b16 %v2352, %v2349
  %v2404 = vpack.c.b16 %v2353, %v2350
  %v2405 = vpack.c.b16 %v2354, %v2351
  %v2406 = vpack.c.b16 %v2358, %v2355
  %v2407 = vpack.c.b16 %v2359, %v2356
  %v2408 = vpack.c.b16 %v2360, %v2357
  %v2409 = vpack.c.b16 %v2364, %v2361
  %v2410 = vpack.c.b16 %v2365, %v2362
  %v2411 = vpack.c.b16 %v2366, %v2363
  %v2412 = vpack.c.b16 %v2370, %v2367
  %v2413 = vpack.c.b16 %v2371, %v2368
  %v2414 = vpack.c.b16 %v2372, %v2369
  %v2415 = vpack.c.b16 %v2376, %v2373
  %v2416 = vpack.c.b16 %v2377, %v2374
  %v2417 = vpack.c.b16 %v2378, %v2375
  %v2418 = vpack.c.b16 %v2382, %v2379
  %v2419 = vpack.c.b16 %v2383, %v2380
  %v2420 = vpack.c.b16 %v2384, %v2381
  %v2421 = vpack.c.b16 %v2388, %v2385
  %v2422 = vpack.c.b16 %v2389, %v2386
  %v2423 = vpack.c.b16 %v2390, %v2387
  %v2424 = vpack.c.b16 %v2394, %v2391
  %v2425 = vpack.c.b16 %v2395, %v2392
  %v2426 = vpack.c.b16 %v2396, %v2393
  %v2427 = vpack.c.b16 %v2400, %v2397
  %v2428 = vpack.c.b16 %v2401, %v2398
  %v2429 = vpack.c.b16 %v2402, %v2399
  %2457 = vmatprep.subr.bf16.mxu0 0
  %2458 = vmatpush1.bf16.msra.mxu0 %v1282
  %2459 = vmatprep.subr.bf16.mxu0 0
  %2460 = vmatpush1.bf16.msra.mxu0 %v1285
  %2461 = vmatprep.subr.bf16.mxu0 0
  %2462 = vmatpush1.bf16.msra.mxu0 %v1288
  %2463 = vmatprep.subr.bf16.mxu0 0
  %2464 = vmatpush1.bf16.msra.mxu0 %v1291
  %2465 = vmatprep.subr.bf16.mxu0 0
  %2466 = vmatpush1.bf16.msra.mxu0 %v1294
  %2467 = vmatprep.subr.bf16.mxu0 0
  %2468 = vmatpush1.bf16.msra.mxu0 %v1297
  %2469 = vmatprep.subr.bf16.mxu0 0
  %2470 = vmatpush1.bf16.msra.mxu0 %v1300
  %2471 = vmatprep.subr.bf16.mxu0 0
  %2472 = vmatpush1.bf16.msra.mxu0 %v1303
  %2473 = vmatprep.subr.bf16.mxu0 0
  %2474 = vmatpush1.bf16.msra.mxu0 %v1306
  %2475 = vmatprep.subr.bf16.mxu0 0
  %2476 = vmatpush1.bf16.msra.mxu0 %v1309
  %2477 = vmatprep.subr.bf16.mxu0 0
  %2478 = vmatpush1.bf16.msra.mxu0 %v1312
  %2479 = vmatprep.subr.bf16.mxu0 0
  %2480 = vmatpush1.bf16.msra.mxu0 %v1315
  %2481 = vmatprep.subr.bf16.mxu0 0
  %2482 = vmatpush1.bf16.msra.mxu0 %v2145
  %2483 = vmatprep.subr.bf16.mxu0 0
  %2484 = vmatpush1.bf16.msra.mxu0 %v2147
  %2485 = vmatprep.subr.bf16.mxu0 0
  %2486 = vmatpush1.bf16.msra.mxu0 %v2149
  %2487 = vmatprep.subr.bf16.mxu0 0
  %2488 = vmatpush1.bf16.msra.mxu0 %v2151
  %2489 = vmatprep.mubr.bf16.mxu0 %v2404
  %2490 = vmatmul.mubr.bf16.gmra.mrb[0].mxu0 %v2403
  %v2491 = vpop.f32.mrb[0].mxu0
  %v2492 = vadd.f32 %v2226, %v2491
  %v2493 = vpop.f32.mrb[0].mxu0
  %v2494 = vpop.f32.mrb[0].mxu0
  %v2495 = vadd.f32 %v2231, %v2494
  %v2496 = vpop.f32.mrb[0].mxu0
  %2497 = vmatprep.mubr.bf16.mxu0 %v2407
  %2498 = vmatmul.mubr.bf16.gmra.mrb[0].mxu0 %v2406
  %v2499 = vpop.f32.mrb[0].mxu0
  %v2500 = vadd.f32 %v2236, %v2499
  %v2501 = vpop.f32.mrb[0].mxu0
  %v2502 = vpop.f32.mrb[0].mxu0
  %v2503 = vadd.f32 %v2241, %v2502
  %v2504 = vpop.f32.mrb[0].mxu0
  %2505 = vmatprep.mubr.bf16.mxu0 %v2410
  %2506 = vmatmul.mubr.bf16.gmra.mrb[0].mxu0 %v2409
  %v2507 = vpop.f32.mrb[0].mxu0
  %v2508 = vadd.f32 %v2246, %v2507
  %v2509 = vpop.f32.mrb[0].mxu0
  %v2510 = vpop.f32.mrb[0].mxu0
  %v2511 = vadd.f32 %v2251, %v2510
  %v2512 = vpop.f32.mrb[0].mxu0
  %2513 = vmatprep.mubr.bf16.mxu0 %v2413
  %2514 = vmatmul.mubr.bf16.gmra.mrb[0].mxu0 %v2412
  %v2515 = vpop.f32.mrb[0].mxu0
  %v2516 = vadd.f32 %v2256, %v2515
  %v2517 = vpop.f32.mrb[0].mxu0
  %v2518 = vpop.f32.mrb[0].mxu0
  %v2519 = vadd.f32 %v2261, %v2518
  %v2520 = vpop.f32.mrb[0].mxu0
  %2521 = vmatprep.mubr.bf16.mxu0 %v2416
  %2522 = vmatmul.mubr.bf16.gmra.mrb[0].mxu0 %v2415
  %v2523 = vpop.f32.mrb[0].mxu0
  %v2524 = vadd.f32 %v2266, %v2523
  %v2525 = vpop.f32.mrb[0].mxu0
  %v2526 = vpop.f32.mrb[0].mxu0
  %v2527 = vadd.f32 %v2271, %v2526
  %v2528 = vpop.f32.mrb[0].mxu0
  %2529 = vmatprep.mubr.bf16.mxu0 %v2419
  %2530 = vmatmul.mubr.bf16.gmra.mrb[0].mxu0 %v2418
  %v2531 = vpop.f32.mrb[0].mxu0
  %v2532 = vadd.f32 %v2276, %v2531
  %v2533 = vpop.f32.mrb[0].mxu0
  %v2534 = vpop.f32.mrb[0].mxu0
  %v2535 = vadd.f32 %v2281, %v2534
  %v2536 = vpop.f32.mrb[0].mxu0
  %2537 = vmatprep.mubr.bf16.mxu0 %v2422
  %2538 = vmatmul.mubr.bf16.gmra.mrb[0].mxu0 %v2421
  %v2539 = vpop.f32.mrb[0].mxu0
  %v2540 = vadd.f32 %v2286, %v2539
  %v2541 = vpop.f32.mrb[0].mxu0
  %v2542 = vpop.f32.mrb[0].mxu0
  %v2543 = vadd.f32 %v2291, %v2542
  %v2544 = vpop.f32.mrb[0].mxu0
  %2545 = vmatprep.mubr.bf16.mxu0 %v2425
  %2546 = vmatmul.mubr.bf16.gmra.mrb[0].mxu0 %v2424
  %v2547 = vpop.f32.mrb[0].mxu0
  %v2548 = vadd.f32 %v2296, %v2547
  %v2549 = vpop.f32.mrb[0].mxu0
  %v2550 = vpop.f32.mrb[0].mxu0
  %v2551 = vadd.f32 %v2301, %v2550
  %v2552 = vpop.f32.mrb[0].mxu0
  %2553 = vmatprep.mubr.bf16.mxu0 %v2428
  %2554 = vmatmul.mubr.bf16.gmra.mrb[0].mxu0 %v2427
  %v2555 = vpop.f32.mrb[0].mxu0
  %v2556 = vadd.f32 %v2306, %v2555
  %v2557 = vpop.f32.mrb[0].mxu0
  %v2558 = vpop.f32.mrb[0].mxu0
  %v2559 = vadd.f32 %v2311, %v2558
  %v2560 = vpop.f32.mrb[0].mxu0
  %2561 = vdwg.mxu0
  %2562 = vmatprep.subr.bf16.mxu0 0
  %2563 = vmatpush1.bf16.msra.mxu0 %v2153
  %2564 = vmatprep.subr.bf16.mxu0 0
  %2565 = vmatpush1.bf16.msra.mxu0 %v2155
  %2566 = vmatprep.subr.bf16.mxu0 0
  %2567 = vmatpush1.bf16.msra.mxu0 %v2157
  %2568 = vmatprep.subr.bf16.mxu0 0
  %2569 = vmatpush1.bf16.msra.mxu0 %v2159
  %2570 = vmatprep.subr.bf16.mxu0 0
  %2571 = vmatpush1.bf16.msra.mxu0 %v2161
  %2572 = vmatprep.subr.bf16.mxu0 0
  %2573 = vmatpush1.bf16.msra.mxu0 %v2163
  %2574 = vmatprep.subr.bf16.mxu0 0
  %2575 = vmatpush1.bf16.msra.mxu0 %v2165
  %2576 = vmatprep.subr.bf16.mxu0 0
  %2577 = vmatpush1.bf16.msra.mxu0 %v2167
  %2578 = vmatprep.subr.bf16.mxu0 0
  %2579 = vmatpush1.bf16.msra.mxu0 0
  %2580 = vmatprep.subr.bf16.mxu0 0
  %2581 = vmatpush1.bf16.msra.mxu0 0
  %2582 = vmatprep.subr.bf16.mxu0 0
  %2583 = vmatpush1.bf16.msra.mxu0 0
  %2584 = vmatprep.subr.bf16.mxu0 0
  %2585 = vmatpush1.bf16.msra.mxu0 0
  %2586 = vmatprep.subr.bf16.mxu0 0
  %2587 = vmatpush1.bf16.msra.mxu0 0
  %2588 = vmatprep.subr.bf16.mxu0 0
  %2589 = vmatpush1.bf16.msra.mxu0 0
  %2590 = vmatprep.subr.bf16.mxu0 0
  %2591 = vmatpush1.bf16.msra.mxu0 0
  %2592 = vmatprep.subr.bf16.mxu0 0
  %2593 = vmatpush1.bf16.msra.mxu0 0
  %2594 = vmatprep.mubr.bf16.mxu0 0
  %2595 = vmatmul.mubr.bf16.gmra.mrb[0].mxu0 %v2405
  %v2596 = vpop.f32.mrb[0].mxu0
  %v2597 = vadd.f32 %v2492, %v2596
  %v2598 = vpop.f32.mrb[0].mxu0
  %v2599 = vpop.f32.mrb[0].mxu0
  %v2600 = vadd.f32 %v2495, %v2599
  %v2601 = vpop.f32.mrb[0].mxu0
  %2602 = vmatprep.mubr.bf16.mxu0 0
  %2603 = vmatmul.mubr.bf16.gmra.mrb[0].mxu0 %v2408
  %v2604 = vpop.f32.mrb[0].mxu0
  %v2605 = vadd.f32 %v2500, %v2604
  %v2606 = vpop.f32.mrb[0].mxu0
  %v2607 = vpop.f32.mrb[0].mxu0
  %v2608 = vadd.f32 %v2503, %v2607
  %v2609 = vpop.f32.mrb[0].mxu0
  %2610 = vmatprep.mubr.bf16.mxu0 0
  %2611 = vmatmul.mubr.bf16.gmra.mrb[0].mxu0 %v2411
  %v2612 = vpop.f32.mrb[0].mxu0
  %v2613 = vadd.f32 %v2508, %v2612
  %v2614 = vpop.f32.mrb[0].mxu0
  %v2615 = vpop.f32.mrb[0].mxu0
  %v2616 = vadd.f32 %v2511, %v2615
  %v2617 = vpop.f32.mrb[0].mxu0
  %2618 = vmatprep.mubr.bf16.mxu0 0
  %2619 = vmatmul.mubr.bf16.gmra.mrb[0].mxu0 %v2414
  %v2620 = vpop.f32.mrb[0].mxu0
  %v2621 = vadd.f32 %v2516, %v2620
  %v2622 = vpop.f32.mrb[0].mxu0
  %v2623 = vpop.f32.mrb[0].mxu0
  %v2624 = vadd.f32 %v2519, %v2623
  %v2625 = vpop.f32.mrb[0].mxu0
  %2626 = vmatprep.mubr.bf16.mxu0 0
  %2627 = vmatmul.mubr.bf16.gmra.mrb[0].mxu0 %v2417
  %v2628 = vpop.f32.mrb[0].mxu0
  %v2629 = vadd.f32 %v2524, %v2628
  %v2630 = vpop.f32.mrb[0].mxu0
  %v2631 = vpop.f32.mrb[0].mxu0
  %v2632 = vadd.f32 %v2527, %v2631
  %v2633 = vpop.f32.mrb[0].mxu0
  %2634 = vmatprep.mubr.bf16.mxu0 0
  %2635 = vmatmul.mubr.bf16.gmra.mrb[0].mxu0 %v2420
  %v2636 = vpop.f32.mrb[0].mxu0
  %v2637 = vadd.f32 %v2532, %v2636
  %v2638 = vpop.f32.mrb[0].mxu0
  %v2639 = vpop.f32.mrb[0].mxu0
  %v2640 = vadd.f32 %v2535, %v2639
  %v2641 = vpop.f32.mrb[0].mxu0
  %2642 = vmatprep.mubr.bf16.mxu0 0
  %2643 = vmatmul.mubr.bf16.gmra.mrb[0].mxu0 %v2423
  %v2644 = vpop.f32.mrb[0].mxu0
  %v2645 = vadd.f32 %v2540, %v2644
  %v2646 = vpop.f32.mrb[0].mxu0
  %v2647 = vpop.f32.mrb[0].mxu0
  %v2648 = vadd.f32 %v2543, %v2647
  %v2649 = vpop.f32.mrb[0].mxu0
  %2650 = vmatprep.mubr.bf16.mxu0 0
  %2651 = vmatmul.mubr.bf16.gmra.mrb[0].mxu0 %v2426
  %v2652 = vpop.f32.mrb[0].mxu0
  %v2653 = vadd.f32 %v2548, %v2652
  %v2654 = vpop.f32.mrb[0].mxu0
  %v2655 = vpop.f32.mrb[0].mxu0
  %v2656 = vadd.f32 %v2551, %v2655
  %v2657 = vpop.f32.mrb[0].mxu0
  %2658 = vmatprep.mubr.bf16.mxu0 0
  %2659 = vmatmul.mubr.bf16.gmra.mrb[0].mxu0 %v2429
  %v2660 = vpop.f32.mrb[0].mxu0
  %v2661 = vadd.f32 %v2556, %v2660
  %v2662 = vpop.f32.mrb[0].mxu0
  %v2663 = vpop.f32.mrb[0].mxu0
  %v2664 = vadd.f32 %v2559, %v2663
  %v2665 = vpop.f32.mrb[0].mxu0
  %2666 = vdwg.mxu0
  %v2667 = vpack.c.bf16 %v2600, %v2597
  %v2668 = vpack.c.bf16 %v2608, %v2605
  %v2669 = vpack.c.bf16 %v2616, %v2613
  %v2670 = vpack.c.bf16 %v2624, %v2621
  %v2671 = vpack.c.bf16 %v2632, %v2629
  %v2672 = vpack.c.bf16 %v2640, %v2637
  %v2673 = vpack.c.bf16 %v2648, %v2645
  %v2674 = vpack.c.bf16 %v2656, %v2653
  %v2675 = vpack.c.bf16 %v2664, %v2661
  %2685 = vrot.lane.b32.xlu0 %v2667, 126
  %v2686 = vpop.permute.xlu0 %2685
  %2687 = vrot.lane.b32.xlu0 %v2668, 126
  %v2688 = vpop.permute.xlu0 %2687
  %2689 = vrot.lane.b32.xlu0 %v2669, 126
  %v2690 = vpop.permute.xlu0 %2689
  %2691 = vrot.lane.b32.xlu0 %v2670, 126
  %v2692 = vpop.permute.xlu0 %2691
  %2693 = vrot.lane.b32.xlu0 %v2671, 126
  %v2694 = vpop.permute.xlu0 %2693
  %2695 = vrot.lane.b32.xlu0 %v2672, 126
  %v2696 = vpop.permute.xlu0 %2695
  %2697 = vrot.lane.b32.xlu0 %v2673, 126
  %v2698 = vpop.permute.xlu0 %2697
  %2699 = vrot.lane.b32.xlu0 %v2674, 126
  %v2700 = vpop.permute.xlu0 %2699
  %2701 = vrot.lane.b32.xlu0 %v2675, 126
  %v2702 = vpop.permute.xlu0 %2701
  %2703 = vrot.lane.b32.xlu0 %v2667, 124
  %v2704 = vpop.permute.xlu0 %2703
  %2705 = vrot.lane.b32.xlu0 %v2668, 124
  %v2706 = vpop.permute.xlu0 %2705
  %2707 = vrot.lane.b32.xlu0 %v2669, 124
  %v2708 = vpop.permute.xlu0 %2707
  %2709 = vrot.lane.b32.xlu0 %v2670, 124
  %v2710 = vpop.permute.xlu0 %2709
  %2711 = vrot.lane.b32.xlu0 %v2671, 124
  %v2712 = vpop.permute.xlu0 %2711
  %2713 = vrot.lane.b32.xlu0 %v2672, 124
  %v2714 = vpop.permute.xlu0 %2713
  %2715 = vrot.lane.b32.xlu0 %v2673, 124
  %v2716 = vpop.permute.xlu0 %2715
  %2717 = vrot.lane.b32.xlu0 %v2674, 124
  %v2718 = vpop.permute.xlu0 %2717
  %2719 = vrot.lane.b32.xlu0 %v2675, 124
  %v2720 = vpop.permute.xlu0 %2719
  %2721 = vrot.lane.b32.xlu0 %v2667, 122
  %v2722 = vpop.permute.xlu0 %2721
  %2723 = vrot.lane.b32.xlu0 %v2668, 122
  %v2724 = vpop.permute.xlu0 %2723
  %2725 = vrot.lane.b32.xlu0 %v2669, 122
  %v2726 = vpop.permute.xlu0 %2725
  %2727 = vrot.lane.b32.xlu0 %v2670, 122
  %v2728 = vpop.permute.xlu0 %2727
  %2729 = vrot.lane.b32.xlu0 %v2671, 122
  %v2730 = vpop.permute.xlu0 %2729
  %2731 = vrot.lane.b32.xlu0 %v2672, 122
  %v2732 = vpop.permute.xlu0 %2731
  %2733 = vrot.lane.b32.xlu0 %v2673, 122
  %v2734 = vpop.permute.xlu0 %2733
  %2735 = vrot.lane.b32.xlu0 %v2674, 122
  %v2736 = vpop.permute.xlu0 %2735
  %2737 = vrot.lane.b32.xlu0 %v2675, 122
  %v2738 = vpop.permute.xlu0 %2737
  %v2741 = vsel %vm1104, %v2667, %v2686
  %v2744 = vsel %vm1104, %v2668, %v2688
  %v2747 = vsel %vm1104, %v2669, %v2690
  %v2750 = vsel %vm1104, %v2670, %v2692
  %v2753 = vsel %vm1104, %v2671, %v2694
  %v2756 = vsel %vm1104, %v2672, %v2696
  %v2759 = vsel %vm1104, %v2673, %v2698
  %v2762 = vsel %vm1104, %v2674, %v2700
  %v2765 = vsel %vm1104, %v2675, %v2702
  %v2767 = vsel %vm1130, %v2741, %v2704
  %v2769 = vsel %vm1130, %v2744, %v2706
  %v2771 = vsel %vm1130, %v2747, %v2708
  %v2773 = vsel %vm1130, %v2750, %v2710
  %v2775 = vsel %vm1130, %v2753, %v2712
  %v2777 = vsel %vm1130, %v2756, %v2714
  %v2779 = vsel %vm1130, %v2759, %v2716
  %v2781 = vsel %vm1130, %v2762, %v2718
  %v2783 = vsel %vm1130, %v2765, %v2720
  %v2785 = vsel %vm1155, %v2767, %v2722
  %v2788 = vsel %vm1155, %v2769, %v2724
  %v2791 = vsel %vm1155, %v2771, %v2726
  %v2794 = vsel %vm1155, %v2773, %v2728
  %v2797 = vsel %vm1155, %v2775, %v2730
  %v2800 = vsel %vm1155, %v2777, %v2732
  %v2803 = vsel %vm1155, %v2779, %v2734
  %v2806 = vsel %vm1155, %v2781, %v2736
  %v2809 = vsel %vm1155, %v2783, %v2738
  %2811 = vrot.lane.b32.xlu0 %v2667, 120
  %v2812 = vpop.permute.xlu0 %2811
  %2813 = vrot.lane.b32.xlu0 %v2668, 120
  %v2814 = vpop.permute.xlu0 %2813
  %2815 = vrot.lane.b32.xlu0 %v2669, 120
  %v2816 = vpop.permute.xlu0 %2815
  %2817 = vrot.lane.b32.xlu0 %v2670, 120
  %v2818 = vpop.permute.xlu0 %2817
  %2819 = vrot.lane.b32.xlu0 %v2671, 120
  %v2820 = vpop.permute.xlu0 %2819
  %2821 = vrot.lane.b32.xlu0 %v2672, 120
  %v2822 = vpop.permute.xlu0 %2821
  %2823 = vrot.lane.b32.xlu0 %v2673, 120
  %v2824 = vpop.permute.xlu0 %2823
  %2825 = vrot.lane.b32.xlu0 %v2674, 120
  %v2826 = vpop.permute.xlu0 %2825
  %2827 = vrot.lane.b32.xlu0 %v2675, 120
  %v2828 = vpop.permute.xlu0 %2827
  %v2829 = vsel %vm1104, %v2686, %v2704
  %v2830 = vsel %vm1104, %v2688, %v2706
  %v2831 = vsel %vm1104, %v2690, %v2708
  %v2832 = vsel %vm1104, %v2692, %v2710
  %v2833 = vsel %vm1104, %v2694, %v2712
  %v2834 = vsel %vm1104, %v2696, %v2714
  %v2835 = vsel %vm1104, %v2698, %v2716
  %v2836 = vsel %vm1104, %v2700, %v2718
  %v2837 = vsel %vm1104, %v2702, %v2720
  %v2838 = vsel %vm1130, %v2829, %v2722
  %v2839 = vsel %vm1130, %v2830, %v2724
  %v2840 = vsel %vm1130, %v2831, %v2726
  %v2841 = vsel %vm1130, %v2832, %v2728
  %v2842 = vsel %vm1130, %v2833, %v2730
  %v2843 = vsel %vm1130, %v2834, %v2732
  %v2844 = vsel %vm1130, %v2835, %v2734
  %v2845 = vsel %vm1130, %v2836, %v2736
  %v2846 = vsel %vm1130, %v2837, %v2738
  %v2848 = vsel %vm1155, %v2838, %v2812
  %v2851 = vsel %vm1155, %v2839, %v2814
  %v2854 = vsel %vm1155, %v2840, %v2816
  %v2857 = vsel %vm1155, %v2841, %v2818
  %v2860 = vsel %vm1155, %v2842, %v2820
  %v2863 = vsel %vm1155, %v2843, %v2822
  %v2866 = vsel %vm1155, %v2844, %v2824
  %v2869 = vsel %vm1155, %v2845, %v2826
  %v2872 = vsel %vm1155, %v2846, %v2828
  %v2874 = vld [vmem:[%s3] sm:$0xff]
  %v2875 = vld [vmem:[%s3 + $0x8] sm:$0xf]
  %v2876 = vld [vmem:[%s3 + $0xc] sm:$0xff]
  %v2877 = vld [vmem:[%s3 + $0x14] sm:$0xf]
  %v2878 = vld [vmem:[%s3 + $0x18] sm:$0xff]
  %v2879 = vld [vmem:[%s3 + $0x20] sm:$0xf]
  %v2880 = vld [vmem:[%s3 + $0x24] sm:$0xff]
  %v2881 = vld [vmem:[%s3 + $0x2c] sm:$0xf]
  %v2882 = vld [vmem:[%s3 + $0x30] sm:$0xff]
  %v2883 = vld [vmem:[%s3 + $0x38] sm:$0xf]
  %v2884 = vld [vmem:[%s3 + $0x3c] sm:$0xff]
  %v2885 = vld [vmem:[%s3 + $0x44] sm:$0xf]
  %v2886 = vld [vmem:[%s3 + $0x48] sm:$0xff]
  %v2887 = vld [vmem:[%s3 + $0x50] sm:$0xf]
  %v2888 = vld [vmem:[%s3 + $0x54] sm:$0xff]
  %v2889 = vld [vmem:[%s3 + $0x5c] sm:$0xf]
  %v2890 = vld [vmem:[%s3 + $0x60] sm:$0xff]
  %v2891 = vld [vmem:[%s3 + $0x68] sm:$0xf]
  %v2892 = vld [vmem:[%s3 + $0x6c] sm:$0xff]
  %v2893 = vld [vmem:[%s3 + $0x74] sm:$0xf]
  %v2894 = vld [vmem:[%s3 + $0x78] sm:$0xff]
  %v2895 = vld [vmem:[%s3 + $0x80] sm:$0xf]
  %v2896 = vld [vmem:[%s3 + $0x84] sm:$0xff]
  %v2897 = vld [vmem:[%s3 + $0x8c] sm:$0xf]
  %v2898 = vld [vmem:[%s4] sm:$0xff]
  %v2899 = vld [vmem:[%s4 + $0x8] sm:$0xff]
  %v2900 = vld [vmem:[%s4 + $0x10] sm:$0xff]
  %v2901 = vld [vmem:[%s4 + $0x18] sm:$0xff]
  %v2902 = vld [vmem:[%s4 + $0x20] sm:$0xff]
  %v2903 = vld [vmem:[%s4 + $0x28] sm:$0xff]
  %v2904 = vld [vmem:[%s4 + $0x30] sm:$0xff]
  %v2905 = vld [vmem:[%s4 + $0x38] sm:$0xff]
  %v2906 = vld [vmem:[%s4 + $0x40] sm:$0xff]
  %v2907 = vld [vmem:[%s4 + $0x48] sm:$0xff]
  %v2908 = vld [vmem:[%s4 + $0x50] sm:$0xff]
  %v2909 = vld [vmem:[%s4 + $0x58] sm:$0xff]
  %2911 = vset.pattern.permute.xlu0 0
  %2912 = vperm.xlu0 %2911, %v2898
  %v2913 = vpop.permute.xlu0 %2912
  %2916 = vset.pattern.permute.xlu0 0
  %2917 = vperm.xlu0 %2916, %v2899
  %v2918 = vpop.permute.xlu0 %2917
  %2921 = vset.pattern.permute.xlu0 0
  %2922 = vperm.xlu0 %2921, %v2900
  %v2923 = vpop.permute.xlu0 %2922
  %2926 = vset.pattern.permute.xlu0 0
  %2927 = vperm.xlu0 %2926, %v2901
  %v2928 = vpop.permute.xlu0 %2927
  %2931 = vset.pattern.permute.xlu0 0
  %2932 = vperm.xlu0 %2931, %v2902
  %v2933 = vpop.permute.xlu0 %2932
  %2936 = vset.pattern.permute.xlu0 0
  %2937 = vperm.xlu0 %2936, %v2903
  %v2938 = vpop.permute.xlu0 %2937
  %2941 = vset.pattern.permute.xlu0 0
  %2942 = vperm.xlu0 %2941, %v2904
  %v2943 = vpop.permute.xlu0 %2942
  %2946 = vset.pattern.permute.xlu0 0
  %2947 = vperm.xlu0 %2946, %v2905
  %v2948 = vpop.permute.xlu0 %2947
  %2951 = vset.pattern.permute.xlu0 0
  %2952 = vperm.xlu0 %2951, %v2906
  %v2953 = vpop.permute.xlu0 %2952
  %2956 = vset.pattern.permute.xlu0 0
  %2957 = vperm.xlu0 %2956, %v2907
  %v2958 = vpop.permute.xlu0 %2957
  %2961 = vset.pattern.permute.xlu0 0
  %2962 = vperm.xlu0 %2961, %v2908
  %v2963 = vpop.permute.xlu0 %2962
  %2966 = vset.pattern.permute.xlu0 0
  %2967 = vperm.xlu0 %2966, %v2909
  %v2968 = vpop.permute.xlu0 %2967
  %v2994 = vunpack.c.l.b16 %v2874
  %v2995 = vunpack.c.h.b16 %v2874
  %v2996 = vunpack.c.l.b16 %v2875
  %v2997 = vunpack.c.l.b16 %v2876
  %v2998 = vunpack.c.h.b16 %v2876
  %v2999 = vunpack.c.l.b16 %v2877
  %v3000 = vunpack.c.l.b16 %v2878
  %v3001 = vunpack.c.h.b16 %v2878
  %v3002 = vunpack.c.l.b16 %v2879
  %v3003 = vunpack.c.l.b16 %v2880
  %v3004 = vunpack.c.h.b16 %v2880
  %v3005 = vunpack.c.l.b16 %v2881
  %v3006 = vunpack.c.l.b16 %v2882
  %v3007 = vunpack.c.h.b16 %v2882
  %v3008 = vunpack.c.l.b16 %v2883
  %v3009 = vunpack.c.l.b16 %v2884
  %v3010 = vunpack.c.h.b16 %v2884
  %v3011 = vunpack.c.l.b16 %v2885
  %v3012 = vunpack.c.l.b16 %v2886
  %v3013 = vunpack.c.h.b16 %v2886
  %v3014 = vunpack.c.l.b16 %v2887
  %v3015 = vunpack.c.l.b16 %v2888
  %v3016 = vunpack.c.h.b16 %v2888
  %v3017 = vunpack.c.l.b16 %v2889
  %v3018 = vunpack.c.l.b16 %v2890
  %v3019 = vunpack.c.h.b16 %v2890
  %v3020 = vunpack.c.l.b16 %v2891
  %v3021 = vunpack.c.l.b16 %v2892
  %v3022 = vunpack.c.h.b16 %v2892
  %v3023 = vunpack.c.l.b16 %v2893
  %v3024 = vunpack.c.l.b16 %v2894
  %v3025 = vunpack.c.h.b16 %v2894
  %v3026 = vunpack.c.l.b16 %v2895
  %v3027 = vunpack.c.l.b16 %v2896
  %v3028 = vunpack.c.h.b16 %v2896
  %v3029 = vunpack.c.l.b16 %v2897
  %v3030 = vpack.c.b16 %v2997, %v2994
  %v3031 = vpack.c.b16 %v2998, %v2995
  %v3032 = vpack.c.b16 %v2999, %v2996
  %v3033 = vpack.c.b16 %v3003, %v3000
  %v3034 = vpack.c.b16 %v3004, %v3001
  %v3035 = vpack.c.b16 %v3005, %v3002
  %v3036 = vpack.c.b16 %v3009, %v3006
  %v3037 = vpack.c.b16 %v3010, %v3007
  %v3038 = vpack.c.b16 %v3011, %v3008
  %v3039 = vpack.c.b16 %v3015, %v3012
  %v3040 = vpack.c.b16 %v3016, %v3013
  %v3041 = vpack.c.b16 %v3017, %v3014
  %v3042 = vpack.c.b16 %v3021, %v3018
  %v3043 = vpack.c.b16 %v3022, %v3019
  %v3044 = vpack.c.b16 %v3023, %v3020
  %v3045 = vpack.c.b16 %v3027, %v3024
  %v3046 = vpack.c.b16 %v3028, %v3025
  %v3047 = vpack.c.b16 %v3029, %v3026
  %vm3060 = vcmask 261120
  %v3062 = vsel %vm3060, %v3032, 0
  %v3065 = vsel %vm3060, %v3035, 0
  %v3068 = vsel %vm3060, %v3038, 0
  %v3071 = vsel %vm3060, %v3041, 0
  %v3074 = vsel %vm3060, %v3044, 0
  %v3077 = vsel %vm3060, %v3047, 0
  %3079 = vmatprep.subr.bf16.mxu0 0
  %3080 = vmatpush1.bf16.msra.mxu0 %v2785
  %3081 = vmatprep.subr.bf16.mxu0 0
  %3082 = vmatpush1.bf16.msra.mxu0 %v2788
  %3083 = vmatprep.subr.bf16.mxu0 0
  %3084 = vmatpush1.bf16.msra.mxu0 %v2791
  %3085 = vmatprep.subr.bf16.mxu0 0
  %3086 = vmatpush1.bf16.msra.mxu0 %v2794
  %3087 = vmatprep.subr.bf16.mxu0 0
  %3088 = vmatpush1.bf16.msra.mxu0 %v2797
  %3089 = vmatprep.subr.bf16.mxu0 0
  %3090 = vmatpush1.bf16.msra.mxu0 %v2800
  %3091 = vmatprep.subr.bf16.mxu0 0
  %3092 = vmatpush1.bf16.msra.mxu0 %v2803
  %3093 = vmatprep.subr.bf16.mxu0 0
  %3094 = vmatpush1.bf16.msra.mxu0 %v2806
  %3095 = vmatprep.subr.bf16.mxu0 0
  %3096 = vmatpush1.bf16.msra.mxu0 %v2809
  %3097 = vmatprep.subr.bf16.mxu0 0
  %3098 = vmatpush1.bf16.msra.mxu0 %v2848
  %3099 = vmatprep.subr.bf16.mxu0 0
  %3100 = vmatpush1.bf16.msra.mxu0 %v2851
  %3101 = vmatprep.subr.bf16.mxu0 0
  %3102 = vmatpush1.bf16.msra.mxu0 %v2854
  %3103 = vmatprep.subr.bf16.mxu0 0
  %3104 = vmatpush1.bf16.msra.mxu0 %v2857
  %3105 = vmatprep.subr.bf16.mxu0 0
  %3106 = vmatpush1.bf16.msra.mxu0 %v2860
  %3107 = vmatprep.subr.bf16.mxu0 0
  %3108 = vmatpush1.bf16.msra.mxu0 %v2863
  %3109 = vmatprep.subr.bf16.mxu0 0
  %3110 = vmatpush1.bf16.msra.mxu0 %v2866
  %3111 = vmatprep.mubr.bf16.mxu0 %v3031
  %3112 = vmatmul.mubr.bf16.gmra.mrb[0].mxu0 %v3030
  %v3113 = vpop.f32.mrb[0].mxu0
  %v3114 = vadd.f32 %v2913, %v3113
  %v3115 = vpop.f32.mrb[0].mxu0
  %v3116 = vpop.f32.mrb[0].mxu0
  %v3117 = vadd.f32 %v2918, %v3116
  %v3118 = vpop.f32.mrb[0].mxu0
  %3119 = vmatprep.mubr.bf16.mxu0 %v3034
  %3120 = vmatmul.mubr.bf16.gmra.mrb[0].mxu0 %v3033
  %v3121 = vpop.f32.mrb[0].mxu0
  %v3122 = vadd.f32 %v2923, %v3121
  %v3123 = vpop.f32.mrb[0].mxu0
  %v3124 = vpop.f32.mrb[0].mxu0
  %v3125 = vadd.f32 %v2928, %v3124
  %v3126 = vpop.f32.mrb[0].mxu0
  %3127 = vmatprep.mubr.bf16.mxu0 %v3037
  %3128 = vmatmul.mubr.bf16.gmra.mrb[0].mxu0 %v3036
  %v3129 = vpop.f32.mrb[0].mxu0
  %v3130 = vadd.f32 %v2933, %v3129
  %v3131 = vpop.f32.mrb[0].mxu0
  %v3132 = vpop.f32.mrb[0].mxu0
  %v3133 = vadd.f32 %v2938, %v3132
  %v3134 = vpop.f32.mrb[0].mxu0
  %3135 = vmatprep.mubr.bf16.mxu0 %v3040
  %3136 = vmatmul.mubr.bf16.gmra.mrb[0].mxu0 %v3039
  %v3137 = vpop.f32.mrb[0].mxu0
  %v3138 = vadd.f32 %v2943, %v3137
  %v3139 = vpop.f32.mrb[0].mxu0
  %v3140 = vpop.f32.mrb[0].mxu0
  %v3141 = vadd.f32 %v2948, %v3140
  %v3142 = vpop.f32.mrb[0].mxu0
  %3143 = vmatprep.mubr.bf16.mxu0 %v3043
  %3144 = vmatmul.mubr.bf16.gmra.mrb[0].mxu0 %v3042
  %v3145 = vpop.f32.mrb[0].mxu0
  %v3146 = vadd.f32 %v2953, %v3145
  %v3147 = vpop.f32.mrb[0].mxu0
  %v3148 = vpop.f32.mrb[0].mxu0
  %v3149 = vadd.f32 %v2958, %v3148
  %v3150 = vpop.f32.mrb[0].mxu0
  %3151 = vmatprep.mubr.bf16.mxu0 %v3046
  %3152 = vmatmul.mubr.bf16.gmra.mrb[0].mxu0 %v3045
  %v3153 = vpop.f32.mrb[0].mxu0
  %v3154 = vadd.f32 %v2963, %v3153
  %v3155 = vpop.f32.mrb[0].mxu0
  %v3156 = vpop.f32.mrb[0].mxu0
  %v3157 = vadd.f32 %v2968, %v3156
  %v3158 = vpop.f32.mrb[0].mxu0
  %3159 = vdwg.mxu0
  %3160 = vmatprep.subr.bf16.mxu0 0
  %3161 = vmatpush1.bf16.msra.mxu0 %v2869
  %3162 = vmatprep.subr.bf16.mxu0 0
  %3163 = vmatpush1.bf16.msra.mxu0 %v2872
  %3164 = vmatprep.subr.bf16.mxu0 0
  %3165 = vmatpush1.bf16.msra.mxu0 0
  %3166 = vmatprep.subr.bf16.mxu0 0
  %3167 = vmatpush1.bf16.msra.mxu0 0
  %3168 = vmatprep.subr.bf16.mxu0 0
  %3169 = vmatpush1.bf16.msra.mxu0 0
  %3170 = vmatprep.subr.bf16.mxu0 0
  %3171 = vmatpush1.bf16.msra.mxu0 0
  %3172 = vmatprep.subr.bf16.mxu0 0
  %3173 = vmatpush1.bf16.msra.mxu0 0
  %3174 = vmatprep.subr.bf16.mxu0 0
  %3175 = vmatpush1.bf16.msra.mxu0 0
  %3176 = vmatprep.subr.bf16.mxu0 0
  %3177 = vmatpush1.bf16.msra.mxu0 0
  %3178 = vmatprep.subr.bf16.mxu0 0
  %3179 = vmatpush1.bf16.msra.mxu0 0
  %3180 = vmatprep.subr.bf16.mxu0 0
  %3181 = vmatpush1.bf16.msra.mxu0 0
  %3182 = vmatprep.subr.bf16.mxu0 0
  %3183 = vmatpush1.bf16.msra.mxu0 0
  %3184 = vmatprep.subr.bf16.mxu0 0
  %3185 = vmatpush1.bf16.msra.mxu0 0
  %3186 = vmatprep.subr.bf16.mxu0 0
  %3187 = vmatpush1.bf16.msra.mxu0 0
  %3188 = vmatprep.subr.bf16.mxu0 0
  %3189 = vmatpush1.bf16.msra.mxu0 0
  %3190 = vmatprep.subr.bf16.mxu0 0
  %3191 = vmatpush1.bf16.msra.mxu0 0
  %3192 = vmatprep.mubr.bf16.mxu0 0
  %3193 = vmatmul.mubr.bf16.gmra.mrb[0].mxu0 %v3062
  %v3194 = vpop.f32.mrb[0].mxu0
  %v3195 = vadd.f32 %v3114, %v3194
  %v3196 = vpop.f32.mrb[0].mxu0
  %v3197 = vpop.f32.mrb[0].mxu0
  %v3198 = vadd.f32 %v3117, %v3197
  %v3199 = vpop.f32.mrb[0].mxu0
  %3200 = vmatprep.mubr.bf16.mxu0 0
  %3201 = vmatmul.mubr.bf16.gmra.mrb[0].mxu0 %v3065
  %v3202 = vpop.f32.mrb[0].mxu0
  %v3203 = vadd.f32 %v3122, %v3202
  %v3204 = vpop.f32.mrb[0].mxu0
  %v3205 = vpop.f32.mrb[0].mxu0
  %v3206 = vadd.f32 %v3125, %v3205
  %v3207 = vpop.f32.mrb[0].mxu0
  %3208 = vmatprep.mubr.bf16.mxu0 0
  %3209 = vmatmul.mubr.bf16.gmra.mrb[0].mxu0 %v3068
  %v3210 = vpop.f32.mrb[0].mxu0
  %v3211 = vadd.f32 %v3130, %v3210
  %v3212 = vpop.f32.mrb[0].mxu0
  %v3213 = vpop.f32.mrb[0].mxu0
  %v3214 = vadd.f32 %v3133, %v3213
  %v3215 = vpop.f32.mrb[0].mxu0
  %3216 = vmatprep.mubr.bf16.mxu0 0
  %3217 = vmatmul.mubr.bf16.gmra.mrb[0].mxu0 %v3071
  %v3218 = vpop.f32.mrb[0].mxu0
  %v3219 = vadd.f32 %v3138, %v3218
  %v3220 = vpop.f32.mrb[0].mxu0
  %v3221 = vpop.f32.mrb[0].mxu0
  %v3222 = vadd.f32 %v3141, %v3221
  %v3223 = vpop.f32.mrb[0].mxu0
  %3224 = vmatprep.mubr.bf16.mxu0 0
  %3225 = vmatmul.mubr.bf16.gmra.mrb[0].mxu0 %v3074
  %v3226 = vpop.f32.mrb[0].mxu0
  %v3227 = vadd.f32 %v3146, %v3226
  %v3228 = vpop.f32.mrb[0].mxu0
  %v3229 = vpop.f32.mrb[0].mxu0
  %v3230 = vadd.f32 %v3149, %v3229
  %v3231 = vpop.f32.mrb[0].mxu0
  %3232 = vmatprep.mubr.bf16.mxu0 0
  %3233 = vmatmul.mubr.bf16.gmra.mrb[0].mxu0 %v3077
  %v3234 = vpop.f32.mrb[0].mxu0
  %v3235 = vadd.f32 %v3154, %v3234
  %v3236 = vpop.f32.mrb[0].mxu0
  %v3237 = vpop.f32.mrb[0].mxu0
  %v3238 = vadd.f32 %v3157, %v3237
  %v3239 = vpop.f32.mrb[0].mxu0
  %3240 = vdwg.mxu0
  %v3241 = vpack.c.bf16 %v3198, %v3195
  %v3242 = vpack.c.bf16 %v3206, %v3203
  %v3243 = vpack.c.bf16 %v3214, %v3211
  %v3244 = vpack.c.bf16 %v3222, %v3219
  %v3245 = vpack.c.bf16 %v3230, %v3227
  %v3246 = vpack.c.bf16 %v3238, %v3235
  %3253 = vrot.lane.b32.xlu0 %v3241, 126
  %v3254 = vpop.permute.xlu0 %3253
  %3255 = vrot.lane.b32.xlu0 %v3242, 126
  %v3256 = vpop.permute.xlu0 %3255
  %3257 = vrot.lane.b32.xlu0 %v3243, 126
  %v3258 = vpop.permute.xlu0 %3257
  %3259 = vrot.lane.b32.xlu0 %v3244, 126
  %v3260 = vpop.permute.xlu0 %3259
  %3261 = vrot.lane.b32.xlu0 %v3245, 126
  %v3262 = vpop.permute.xlu0 %3261
  %3263 = vrot.lane.b32.xlu0 %v3246, 126
  %v3264 = vpop.permute.xlu0 %3263
  %v3267 = vsel %vm1104, %v3241, %v3254
  %v3271 = vsel %vm1104, %v3242, %v3256
  %v3275 = vsel %vm1104, %v3243, %v3258
  %v3279 = vsel %vm1104, %v3244, %v3260
  %v3283 = vsel %vm1104, %v3245, %v3262
  %v3287 = vsel %vm1104, %v3246, %v3264
  %3289 = vrot.lane.b32.xlu0 %v3241, 124
  %v3290 = vpop.permute.xlu0 %3289
  %3291 = vrot.lane.b32.xlu0 %v3242, 124
  %v3292 = vpop.permute.xlu0 %3291
  %3293 = vrot.lane.b32.xlu0 %v3243, 124
  %v3294 = vpop.permute.xlu0 %3293
  %3295 = vrot.lane.b32.xlu0 %v3244, 124
  %v3296 = vpop.permute.xlu0 %3295
  %3297 = vrot.lane.b32.xlu0 %v3245, 124
  %v3298 = vpop.permute.xlu0 %3297
  %3299 = vrot.lane.b32.xlu0 %v3246, 124
  %v3300 = vpop.permute.xlu0 %3299
  %v3302 = vsel %vm1104, %v3254, %v3290
  %v3305 = vsel %vm1104, %v3256, %v3292
  %v3308 = vsel %vm1104, %v3258, %v3294
  %v3311 = vsel %vm1104, %v3260, %v3296
  %v3314 = vsel %vm1104, %v3262, %v3298
  %v3317 = vsel %vm1104, %v3264, %v3300
  %v3319 = vld [vmem:[%s5] sm:$0xff]
  %v3320 = vld [vmem:[%s5 + $0x8] sm:$0xff]
  %v3321 = vld [vmem:[%s5 + $0x10] sm:$0xff]
  %v3322 = vld [vmem:[%s5 + $0x18] sm:$0xff]
  %v3323 = vld [vmem:[%s5 + $0x20] sm:$0xff]
  %v3324 = vld [vmem:[%s5 + $0x28] sm:$0xff]
  %v3325 = vld [vmem:[%s6] sm:$0xff]
  %v3326 = vld [vmem:[%s6 + $0x8] sm:$0xff]
  %v3327 = vld [vmem:[%s6 + $0x10] sm:$0xff]
  %v3328 = vld [vmem:[%s6 + $0x18] sm:$0xff]
  %v3329 = vld [vmem:[%s6 + $0x20] sm:$0xff]
  %v3330 = vld [vmem:[%s6 + $0x28] sm:$0xff]
  %3332 = vset.pattern.permute.xlu0 0
  %3333 = vperm.xlu0 %3332, %v3325
  %v3334 = vpop.permute.xlu0 %3333
  %3337 = vset.pattern.permute.xlu0 0
  %3338 = vperm.xlu0 %3337, %v3326
  %v3339 = vpop.permute.xlu0 %3338
  %3342 = vset.pattern.permute.xlu0 0
  %3343 = vperm.xlu0 %3342, %v3327
  %v3344 = vpop.permute.xlu0 %3343
  %3347 = vset.pattern.permute.xlu0 0
  %3348 = vperm.xlu0 %3347, %v3328
  %v3349 = vpop.permute.xlu0 %3348
  %3352 = vset.pattern.permute.xlu0 0
  %3353 = vperm.xlu0 %3352, %v3329
  %v3354 = vpop.permute.xlu0 %3353
  %3357 = vset.pattern.permute.xlu0 0
  %3358 = vperm.xlu0 %3357, %v3330
  %v3359 = vpop.permute.xlu0 %3358
  %v3367 = vunpack.c.l.b16 %v3319
  %v3368 = vunpack.c.h.b16 %v3319
  %v3369 = vunpack.c.l.b16 %v3320
  %v3370 = vunpack.c.h.b16 %v3320
  %v3371 = vunpack.c.l.b16 %v3321
  %v3372 = vunpack.c.h.b16 %v3321
  %v3373 = vunpack.c.l.b16 %v3322
  %v3374 = vunpack.c.h.b16 %v3322
  %v3375 = vunpack.c.l.b16 %v3323
  %v3376 = vunpack.c.h.b16 %v3323
  %v3377 = vunpack.c.l.b16 %v3324
  %v3378 = vunpack.c.h.b16 %v3324
  %v3379 = vpack.c.b16 %v3369, %v3367
  %v3380 = vpack.c.b16 %v3370, %v3368
  %v3381 = vpack.c.b16 %v3373, %v3371
  %v3382 = vpack.c.b16 %v3374, %v3372
  %v3383 = vpack.c.b16 %v3377, %v3375
  %v3384 = vpack.c.b16 %v3378, %v3376
  %vm3388 = vcmask 523264
  %v3390 = vsel %vm3388, %v3380, 0
  %v3393 = vsel %vm3388, %v3382, 0
  %v3396 = vsel %vm3388, %v3384, 0
  %3398 = vmatprep.subr.bf16.mxu0 0
  %3399 = vmatpush1.bf16.msra.mxu0 %v3267
  %3400 = vmatprep.subr.bf16.mxu0 0
  %3401 = vmatpush1.bf16.msra.mxu0 %v3271
  %3402 = vmatprep.subr.bf16.mxu0 0
  %3403 = vmatpush1.bf16.msra.mxu0 %v3275
  %3404 = vmatprep.subr.bf16.mxu0 0
  %3405 = vmatpush1.bf16.msra.mxu0 %v3279
  %3406 = vmatprep.subr.bf16.mxu0 0
  %3407 = vmatpush1.bf16.msra.mxu0 %v3283
  %3408 = vmatprep.subr.bf16.mxu0 0
  %3409 = vmatpush1.bf16.msra.mxu0 %v3287
  %3410 = vmatprep.subr.bf16.mxu0 0
  %3411 = vmatpush1.bf16.msra.mxu0 %v3302
  %3412 = vmatprep.subr.bf16.mxu0 0
  %3413 = vmatpush1.bf16.msra.mxu0 %v3305
  %3414 = vmatprep.subr.bf16.mxu0 0
  %3415 = vmatpush1.bf16.msra.mxu0 %v3308
  %3416 = vmatprep.subr.bf16.mxu0 0
  %3417 = vmatpush1.bf16.msra.mxu0 %v3311
  %3418 = vmatprep.subr.bf16.mxu0 0
  %3419 = vmatpush1.bf16.msra.mxu0 %v3314
  %3420 = vmatprep.subr.bf16.mxu0 0
  %3421 = vmatpush1.bf16.msra.mxu0 %v3317
  %3422 = vmatprep.subr.bf16.mxu0 0
  %3423 = vmatpush1.bf16.msra.mxu0 0
  %3424 = vmatprep.subr.bf16.mxu0 0
  %3425 = vmatpush1.bf16.msra.mxu0 0
  %3426 = vmatprep.subr.bf16.mxu0 0
  %3427 = vmatpush1.bf16.msra.mxu0 0
  %3428 = vmatprep.subr.bf16.mxu0 0
  %3429 = vmatpush1.bf16.msra.mxu0 0
  %3430 = vmatprep.mubr.bf16.mxu0 %v3390
  %3431 = vmatmul.mubr.bf16.gmra.mrb[0].mxu0 %v3379
  %v3432 = vpop.f32.mrb[0].mxu0
  %v3433 = vadd.f32 %v3334, %v3432
  %v3434 = vpop.f32.mrb[0].mxu0
  %v3435 = vpop.f32.mrb[0].mxu0
  %v3436 = vadd.f32 %v3339, %v3435
  %v3437 = vpop.f32.mrb[0].mxu0
  %3438 = vmatprep.mubr.bf16.mxu0 %v3393
  %3439 = vmatmul.mubr.bf16.gmra.mrb[0].mxu0 %v3381
  %v3440 = vpop.f32.mrb[0].mxu0
  %v3441 = vadd.f32 %v3344, %v3440
  %v3442 = vpop.f32.mrb[0].mxu0
  %v3443 = vpop.f32.mrb[0].mxu0
  %v3444 = vadd.f32 %v3349, %v3443
  %v3445 = vpop.f32.mrb[0].mxu0
  %3446 = vmatprep.mubr.bf16.mxu0 %v3396
  %3447 = vmatmul.mubr.bf16.gmra.mrb[0].mxu0 %v3383
  %v3448 = vpop.f32.mrb[0].mxu0
  %v3449 = vadd.f32 %v3354, %v3448
  %v3450 = vpop.f32.mrb[0].mxu0
  %v3451 = vpop.f32.mrb[0].mxu0
  %v3452 = vadd.f32 %v3359, %v3451
  %v3453 = vpop.f32.mrb[0].mxu0
  %3454 = vdwg.mxu0
  %v3455 = vpack.c.bf16 %v3436, %v3433
  %v3456 = vpack.c.bf16 %v3444, %v3441
  %v3457 = vpack.c.bf16 %v3452, %v3449
  %3461 = vrot.lane.b32.xlu0 %v3455, 126
  %v3462 = vpop.permute.xlu0 %3461
  %3463 = vrot.lane.b32.xlu0 %v3456, 126
  %v3464 = vpop.permute.xlu0 %3463
  %3465 = vrot.lane.b32.xlu0 %v3457, 126
  %v3466 = vpop.permute.xlu0 %3465
  %v3470 = vld [vmem:[%s7] sm:$0xf]
  %v3471 = vld [vmem:[%s7 + $0x4] sm:$0xf]
  %v3472 = vld [vmem:[%s7 + $0x8] sm:$0xf]
  %v3473 = vld [vmem:[%s8] sm:$0xff]
  %v3474 = vld [vmem:[%s8 + $0x8] sm:$0xff]
  %v3475 = vld [vmem:[%s8 + $0x10] sm:$0xff]
  %3477 = vset.pattern.permute.xlu0 0
  %3478 = vperm.xlu0 %3477, %v3473
  %v3479 = vpop.permute.xlu0 %3478
  %3482 = vset.pattern.permute.xlu0 0
  %3483 = vperm.xlu0 %3482, %v3474
  %v3484 = vpop.permute.xlu0 %3483
  %3487 = vset.pattern.permute.xlu0 0
  %3488 = vperm.xlu0 %3487, %v3475
  %v3489 = vpop.permute.xlu0 %3488
  %v3494 = vunpack.c.l.b16 %v3470
  %v3495 = vunpack.c.l.b16 %v3471
  %v3496 = vunpack.c.l.b16 %v3472
  %v3497 = vpack.c.b16 %v3495, %v3494
  %v3498 = vpack.c.b16 %v3496, %v3496
  %vm3499 = vcmask 785408
  %v3501 = vsel %vm3499, %v3497, 0
  %v3504 = vsel %vm3499, %v3498, 0
  %3506 = vmatprep.subr.bf16.mxu0 0
  %3507 = vmatpush1.bf16.msra.mxu0 %v3455
  %3508 = vmatprep.subr.bf16.mxu0 0
  %3509 = vmatpush1.bf16.msra.mxu0 %v3456
  %3510 = vmatprep.subr.bf16.mxu0 0
  %3511 = vmatpush1.bf16.msra.mxu0 %v3457
  %3512 = vmatprep.subr.bf16.mxu0 0
  %3513 = vmatpush1.bf16.msra.mxu0 %v3462
  %3514 = vmatprep.subr.bf16.mxu0 0
  %3515 = vmatpush1.bf16.msra.mxu0 %v3464
  %3516 = vmatprep.subr.bf16.mxu0 0
  %3517 = vmatpush1.bf16.msra.mxu0 %v3466
  %3518 = vmatprep.subr.bf16.mxu0 0
  %3519 = vmatpush1.bf16.msra.mxu0 0
  %3520 = vmatprep.subr.bf16.mxu0 0
  %3521 = vmatpush1.bf16.msra.mxu0 0
  %3522 = vmatprep.subr.bf16.mxu0 0
  %3523 = vmatpush1.bf16.msra.mxu0 0
  %3524 = vmatprep.subr.bf16.mxu0 0
  %3525 = vmatpush1.bf16.msra.mxu0 0
  %3526 = vmatprep.subr.bf16.mxu0 0
  %3527 = vmatpush1.bf16.msra.mxu0 0
  %3528 = vmatprep.subr.bf16.mxu0 0
  %3529 = vmatpush1.bf16.msra.mxu0 0
  %3530 = vmatprep.subr.bf16.mxu0 0
  %3531 = vmatpush1.bf16.msra.mxu0 0
  %3532 = vmatprep.subr.bf16.mxu0 0
  %3533 = vmatpush1.bf16.msra.mxu0 0
  %3534 = vmatprep.subr.bf16.mxu0 0
  %3535 = vmatpush1.bf16.msra.mxu0 0
  %3536 = vmatprep.subr.bf16.mxu0 0
  %3537 = vmatpush1.bf16.msra.mxu0 0
  %3538 = vmatprep.mubr.bf16.mxu0 0
  %3539 = vmatmul.mubr.bf16.gmra.mrb[0].mxu0 %v3501
  %v3540 = vpop.f32.mrb[0].mxu0
  %v3541 = vadd.f32 %v3479, %v3540
  %v3542 = vpop.f32.mrb[0].mxu0
  %v3543 = vpop.f32.mrb[0].mxu0
  %v3544 = vadd.f32 %v3484, %v3543
  %v3545 = vpop.f32.mrb[0].mxu0
  %3546 = vmatprep.mubr.bf16.mxu0 0
  %3547 = vmatmul.mubr.bf16.gmra.mrb[0].mxu0 %v3504
  %v3548 = vpop.f32.mrb[0].mxu0
  %v3549 = vadd.f32 %v3489, %v3548
  %v3550 = vpop.f32.mrb[0].mxu0
  %v3551 = vpop.f32.mrb[0].mxu0
  %v3552 = vpop.f32.mrb[0].mxu0
  %3553 = vdwg.mxu0
  %3554 = vst.msk [vmem:[%s9] sm:$0xff] %vm1104, %v3541
  %3555 = vst.msk [vmem:[%s9 + $0x8] sm:$0xff] %vm1104, %v3544
  %3556 = vst.msk [vmem:[%s9 + $0x10] sm:$0xff] %vm1104, %v3549
  // Predicated region
  $region38: #{encode192.1} parent=0 // pred_check
    _
  $region39: #{encode192.1} parent=0 // pred_check_branch
    %3558 = sbr.rel (0) target = $region41
  $region40: #{encode192.1} parent=0 // pred_region
    _
  $region41: #{encode192.1} parent=0 // pred_fallthru
    _
  // Predicated region
  $region42: #{encode192.1} parent=0 // pred_check
    _
  $region43: #{encode192.1} parent=0 // pred_check_branch
    %3560 = sbr.rel (0) target = $region45
  $region44: #{encode192.1} parent=0 // pred_region
    _
  $region45: #{encode192.1} parent=0 // pred_fallthru
    _

</llo_original>
